<compile_context>
chip_gen: v6e
topology: v6e:2x2x1
jax: 0.10.0
libtpu: 0.0.40
codegen_flags: <defaults>
</compile_context>

<pallas_src>
import functools

import jax
import jax.numpy as jnp
import numpy as np
from jax.experimental import pallas as pl
from jax.experimental.pallas import tpu as pltpu


def _round_up(x, m):
    return ((x + m - 1) // m) * m


def _block_kernel(x_ref, wm1_ref, m1_ref, wm2_ref, m2_ref, o_ref,
                  pad_ref, s_ref, *, NB, H, W, C, K1, K2, OFF):
    """One chunk of NB batch elements per grid step.

    x_ref  : (NB, C, H*W)        channel-major images, spatial flattened in lanes
    wm*_ref: (C, K*K*C + 1)      flipped ConvT weights (tap-major) + bias column
    m*_ref : (K*K, N)            1.0 where the tap's source pixel is in-bounds
    o_ref  : (NB, C, H*W)        output
    pad_ref: (C, BUF) scratch    lane-padded staging row; images start at OFF
    s_ref  : (S_ROWS, N) scratch im2col matrix (RHS of the per-conv matmul)
    """
    HW = H * W
    N = NB * HW

    def im2col_matmul(wm_ref, m_ref, K):
        """Conv over whatever is currently staged at pad_ref[:, OFF:OFF+N]."""
        p_lo = (K - 1) - (K - 1) // 2
        r = 0
        for kh in range(K):                                   # static unroll
            for kw in range(K):
                off = (kh - p_lo) * W + (kw - p_lo)
                shifted = pad_ref[:, OFF + off:OFF + off + N]    # (C, N)
                tap = kh * K + kw
                mask = m_ref[tap:tap + 1, :]                     # (1, N)
                # select (not multiply) so never-written halo lanes can't leak
                s_ref[r:r + C, :] = jnp.where(mask > 0.5, shifted, 0.0)
                r += C
        s_ref[r:r + 1, :] = jnp.ones((1, N), jnp.float32)        # bias row
        # One im2col matmul per conv: (C, K*K*C+1) @ (K*K*C+1, N) on the MXU.
        return jnp.dot(wm_ref[...], s_ref[0:r + 1, :],
                       preferred_element_type=jnp.float32)       # (C, N)

    # conv1: stage the NB images channel-major at the aligned interior.
    for b in range(NB):
        pad_ref[:, OFF + b * HW:OFF + (b + 1) * HW] = x_ref[b]
    h1 = jnp.maximum(im2col_matmul(wm1_ref, m1_ref, K1), 0.0)    # (C, N)

    # conv2: restage the activation slab (single aligned store).
    pad_ref[:, OFF:OFF + N] = h1
    h2 = jnp.maximum(im2col_matmul(wm2_ref, m2_ref, K2), 0.0)    # (C, N)

    # identity shortcut + final ReLU, written back per batch element.
    for b in range(NB):
        o_ref[b] = jnp.maximum(h2[:, b * HW:(b + 1) * HW] + x_ref[b], 0.0)


def _prep_weight(w, b, K, C):
    """torch ConvTranspose2d weight (Cin, Cout, K, K) -> (Cout, K*K*Cin + 1).

    Column order matches the im2col rows: flipped taps, (kh, kw, ci)-major,
    plus a trailing bias column (paired with the constant 'ones' im2col row).
    """
    wf = jnp.flip(jnp.asarray(w, jnp.float32), axis=(2, 3))      # (Ci, Co, K, K)
    wm = jnp.transpose(wf, (1, 2, 3, 0)).reshape(C, K * K * C)   # (Co, kh kw ci)
    bias = jnp.asarray(b, jnp.float32).reshape(C, 1)
    return jnp.concatenate([wm, bias], axis=1)


def _make_masks(K, H, W, NB):
    """(K*K, NB*H*W) float mask: 1.0 where tap (kh, kw) reads an in-bounds pixel."""
    p_lo = (K - 1) - (K - 1) // 2
    oh = np.arange(H).reshape(H, 1)
    ow = np.arange(W).reshape(1, W)
    masks = np.zeros((K * K, H * W), np.float32)
    for kh in range(K):
        for kw in range(K):
            dh, dw = kh - p_lo, kw - p_lo
            valid = ((oh + dh >= 0) & (oh + dh < H) &
                     (ow + dw >= 0) & (ow + dw < W))
            masks[kh * K + kw] = valid.reshape(-1).astype(np.float32)
    return jnp.asarray(np.tile(masks, (1, NB)))                  # (K*K, NB*H*W)


def transpose_resnet_block(x_nchw, w1, b1, w2, b2, K1, K2, stride=1):
    """Forward pass of TransposeResNetBlock. x_nchw: (B, C, H, W) float32."""
    assert stride == 1, "residual add requires the size-preserving stride=1 case"
    B, C, H, W = x_nchw.shape
    assert w1.shape == (C, C, K1, K1) and w2.shape == (C, C, K2, K2)
    HW = H * W

    # NCHW is already channel-major / spatial-contiguous, so the lane-dense
    # (B, C, H*W) view is a free reshape (no transpose round trips).
    x_flat = jnp.reshape(x_nchw.astype(jnp.float32), (B, C, HW))

    S_ROWS = max(K1 * K1, K2 * K2) * C + 1

    # Fold as many batch elements as possible into one grid step (largest
    # divisor of B whose im2col scratch fits the budget).
    SCRATCH_BUDGET = 4 * 1024 * 1024
    NB = 1
    for cand in range(B, 0, -1):
        if B % cand == 0 and S_ROWS * cand * HW * 4 <= SCRATCH_BUDGET:
            NB = cand
            break
    G = B // NB
    N = NB * HW

    wm1 = _prep_weight(w1, b1, K1, C)            # (C, K1*K1*C + 1)
    wm2 = _prep_weight(w2, b2, K2, C)            # (C, K2*K2*C + 1)
    m1 = _make_masks(K1, H, W, NB)               # (K1*K1, N)
    m2 = m1 if K2 == K1 else _make_masks(K2, H, W, NB)

    def pad_lo(k):
        return (k - 1) - (k - 1) // 2

    def pad_hi(k):
        return (k - 1) // 2

    max_lo = max(pad_lo(K1), pad_lo(K2))
    max_hi = max(pad_hi(K1), pad_hi(K2))
    OFF = _round_up(max(max_lo * W + max_lo, 1), 128)    # aligned interior start
    BUF = OFF + N + _round_up(max(max_hi * W + max_hi, 1), 128)

    kernel = functools.partial(_block_kernel, NB=NB, H=H, W=W, C=C,
                               K1=K1, K2=K2, OFF=OFF)

    out_flat = pl.pallas_call(
        kernel,
        out_shape=jax.ShapeDtypeStruct((B, C, HW), jnp.float32),
        grid=(G,),
        in_specs=[
            pl.BlockSpec((NB, C, HW), lambda g: (g, 0, 0)),            # x
            pl.BlockSpec((C, K1 * K1 * C + 1), lambda g: (0, 0)),      # wm1+bias
            pl.BlockSpec((K1 * K1, N), lambda g: (0, 0)),              # masks1
            pl.BlockSpec((C, K2 * K2 * C + 1), lambda g: (0, 0)),      # wm2+bias
            pl.BlockSpec((K2 * K2, N), lambda g: (0, 0)),              # masks2
        ],
        out_specs=pl.BlockSpec((NB, C, HW), lambda g: (g, 0, 0)),      # lane-dense
        scratch_shapes=[
            pltpu.VMEM((C, BUF), jnp.float32),       # lane-padded staging row
            pltpu.VMEM((S_ROWS, N), jnp.float32),    # im2col matrix
        ],
        compiler_params=pltpu.CompilerParams(
            dimension_semantics=("parallel",),       # batch chunks independent
            vmem_limit_bytes=32 * 1024 * 1024,
        ),
    )(x_flat, wm1, m1, wm2, m2)

    return jnp.reshape(out_flat, (B, C, H, W))


def _reference_forward(x, w1, b1, w2, b2, K1, K2, stride=1):
    """Independent numpy emulation of the PyTorch module (NCHW)."""
    x = np.asarray(x, np.float32)
    w1, b1 = np.asarray(w1, np.float32), np.asarray(b1, np.float32)
    w2, b2 = np.asarray(w2, np.float32), np.asarray(b2, np.float32)

    def conv_t(inp, w, b, K):
        Bn, Cin, Hh, Ww = inp.shape
        Cout = w.shape[1]
        out = np.zeros((Bn, Cout, Hh + K - 1, Ww + K - 1), np.float32)
        for n in range(Bn):
            for ci in range(Cin):
                for co in range(Cout):
                    for ih in range(Hh):
                        for iw in range(Ww):
                            out[n, co, ih:ih + K, iw:iw + K] += (
                                inp[n, ci, ih, iw] * w[ci, co])
        return out + b[None, :, None, None]

    def same_pad(y, K):
        pad = K - stride
        pt = pad // 2
        pb = pad - pt
        return y[:, :, pt:y.shape[2] - pb, pt:y.shape[3] - pb]

    h = np.maximum(same_pad(conv_t(x, w1, b1, K1), K1), 0.0)
    h = np.maximum(same_pad(conv_t(h, w2, b2, K2), K2), 0.0)
    return np.maximum(h + x, 0.0)


if __name__ == "__main__":
    B, C, H, W = 2, 4, 16, 16      # in_channel == out_channel == 4
    K1, K2, STRIDE = 3, 3, 1

    key = jax.random.PRNGKey(0)
    kx, kw1, kb1, kw2, kb2 = jax.random.split(key, 5)
    x = jax.random.normal(kx, (B, C, H, W), jnp.float32)
    # ConvTranspose2d weight shape: (in_channels, out_channels, K, K)
    w1 = jax.random.normal(kw1, (C, C, K1, K1), jnp.float32) * 0.2
    b1 = jax.random.normal(kb1, (C,), jnp.float32) * 0.1
    w2 = jax.random.normal(kw2, (C, C, K2, K2), jnp.float32) * 0.2
    b2 = jax.random.normal(kb2, (C,), jnp.float32) * 0.1

    out = transpose_resnet_block(x, w1, b1, w2, b2, K1, K2, STRIDE)
    out = jax.block_until_ready(out)

    ref = _reference_forward(x, w1, b1, w2, b2, K1, K2, STRIDE)
    np.testing.assert_allclose(np.asarray(out), ref, atol=1e-3, rtol=1e-3)
    print("KERNEL_OK")
</pallas_src>

<mosaic_0001>
module attributes {stable_mosaic.version = 11 : i64} {
  func.func @_block_kernel(%arg0: i32, %arg1: memref<2x4x256xf32, #tpu.memory_space<vmem>>, %arg2: memref<4x37xf32, #tpu.memory_space<vmem>>, %arg3: memref<9x512xf32, #tpu.memory_space<vmem>>, %arg4: memref<4x37xf32, #tpu.memory_space<vmem>>, %arg5: memref<9x512xf32, #tpu.memory_space<vmem>>, %arg6: memref<2x4x256xf32, #tpu.memory_space<vmem>>, %arg7: memref<4x768xf32, #tpu.memory_space<vmem>>, %arg8: memref<37x512xf32, #tpu.memory_space<vmem>>) attributes {dimension_semantics = [#tpu.dimension_semantics<parallel>], iteration_bounds = array<i64: 1>, scalar_prefetch = 0 : i64, scratch_operands = 2 : i64, tpu.core_type = #tpu.core_type<tc>, window_params = [{transform_indices = @transform_0, window_bounds = array<i64: 2, 4, 256>}, {pipeline_mode = #tpu.pipeline_mode<synchronous>, transform_indices = @transform_1, window_bounds = array<i64: 4, 37>}, {pipeline_mode = #tpu.pipeline_mode<synchronous>, transform_indices = @transform_2, window_bounds = array<i64: 9, 512>}, {pipeline_mode = #tpu.pipeline_mode<synchronous>, transform_indices = @transform_3, window_bounds = array<i64: 4, 37>}, {pipeline_mode = #tpu.pipeline_mode<synchronous>, transform_indices = @transform_4, window_bounds = array<i64: 9, 512>}, {transform_indices = @transform_5, window_bounds = array<i64: 2, 4, 256>}]} {
    %c0 = arith.constant 0 : index
    %c0_0 = arith.constant 0 : index
    %c0_1 = arith.constant 0 : index
    %0 = vector.load %arg1[%c0, %c0_0, %c0_1] : memref<2x4x256xf32, #tpu.memory_space<vmem>>, vector<1x4x256xf32>
    %1 = vector.shape_cast %0 : vector<1x4x256xf32> to vector<4x256xf32>
    %c0_2 = arith.constant 0 : index
    %c128 = arith.constant 128 : index
    %2 = vector.load %arg7[%c0_2, %c128] : memref<4x768xf32, #tpu.memory_space<vmem>>, vector<4x256xf32>
    tpu.vector_store %arg7[%c0_2, %c128], %1 {strides = array<i32>} : memref<4x768xf32, #tpu.memory_space<vmem>>, vector<4x256xf32>,
    %c1 = arith.constant 1 : index
    %c0_3 = arith.constant 0 : index
    %c0_4 = arith.constant 0 : index
    %3 = vector.load %arg1[%c1, %c0_3, %c0_4] : memref<2x4x256xf32, #tpu.memory_space<vmem>>, vector<1x4x256xf32>
    %4 = vector.shape_cast %3 : vector<1x4x256xf32> to vector<4x256xf32>
    %c0_5 = arith.constant 0 : index
    %c384 = arith.constant 384 : index
    %5 = vector.load %arg7[%c0_5, %c384] : memref<4x768xf32, #tpu.memory_space<vmem>>, vector<4x256xf32>
    tpu.vector_store %arg7[%c0_5, %c384], %4 {strides = array<i32>} : memref<4x768xf32, #tpu.memory_space<vmem>>, vector<4x256xf32>,
    %c0_6 = arith.constant 0 : index
    %c111 = arith.constant 111 : index
    %6 = vector.load %arg7[%c0_6, %c111] : memref<4x768xf32, #tpu.memory_space<vmem>>, vector<4x512xf32>
    %c0_7 = arith.constant 0 : index
    %c0_8 = arith.constant 0 : index
    %7 = vector.load %arg3[%c0_7, %c0_8] : memref<9x512xf32, #tpu.memory_space<vmem>>, vector<1x512xf32>
    %cst = arith.constant 5.000000e-01 : f32
    %8 = vector.broadcast %cst : f32 to vector<1x512xf32>
    %9 = arith.cmpf ogt, %7, %8 : vector<1x512xf32>
    %cst_9 = arith.constant 0.000000e+00 : f32
    %10 = vector.shape_cast %9 : vector<1x512xi1> to vector<1x512xi1>
    %11 = vector.broadcast %10 : vector<1x512xi1> to vector<4x512xi1>
    %12 = vector.broadcast %cst_9 : f32 to vector<4x512xf32>
    %13 = arith.select %11, %6, %12 : vector<4x512xi1>, vector<4x512xf32>
    %c0_10 = arith.constant 0 : index
    %c0_11 = arith.constant 0 : index
    %14 = vector.load %arg8[%c0_10, %c0_11] : memref<37x512xf32, #tpu.memory_space<vmem>>, vector<4x512xf32>
    tpu.vector_store %arg8[%c0_10, %c0_11], %13 {strides = array<i32>} : memref<37x512xf32, #tpu.memory_space<vmem>>, vector<4x512xf32>,
    %c0_12 = arith.constant 0 : index
    %c112 = arith.constant 112 : index
    %15 = vector.load %arg7[%c0_12, %c112] : memref<4x768xf32, #tpu.memory_space<vmem>>, vector<4x512xf32>
    %c1_13 = arith.constant 1 : index
    %c0_14 = arith.constant 0 : index
    %16 = vector.load %arg3[%c1_13, %c0_14] : memref<9x512xf32, #tpu.memory_space<vmem>>, vector<1x512xf32>
    %cst_15 = arith.constant 5.000000e-01 : f32
    %17 = vector.broadcast %cst_15 : f32 to vector<1x512xf32>
    %18 = arith.cmpf ogt, %16, %17 : vector<1x512xf32>
    %cst_16 = arith.constant 0.000000e+00 : f32
    %19 = vector.shape_cast %18 : vector<1x512xi1> to vector<1x512xi1>
    %20 = vector.broadcast %19 : vector<1x512xi1> to vector<4x512xi1>
    %21 = vector.broadcast %cst_16 : f32 to vector<4x512xf32>
    %22 = arith.select %20, %15, %21 : vector<4x512xi1>, vector<4x512xf32>
    %c4 = arith.constant 4 : index
    %c0_17 = arith.constant 0 : index
    %23 = vector.load %arg8[%c4, %c0_17] : memref<37x512xf32, #tpu.memory_space<vmem>>, vector<4x512xf32>
    tpu.vector_store %arg8[%c4, %c0_17], %22 {strides = array<i32>} : memref<37x512xf32, #tpu.memory_space<vmem>>, vector<4x512xf32>,
    %c0_18 = arith.constant 0 : index
    %c113 = arith.constant 113 : index
    %24 = vector.load %arg7[%c0_18, %c113] : memref<4x768xf32, #tpu.memory_space<vmem>>, vector<4x512xf32>
    %c2 = arith.constant 2 : index
    %c0_19 = arith.constant 0 : index
    %25 = vector.load %arg3[%c2, %c0_19] : memref<9x512xf32, #tpu.memory_space<vmem>>, vector<1x512xf32>
    %cst_20 = arith.constant 5.000000e-01 : f32
    %26 = vector.broadcast %cst_20 : f32 to vector<1x512xf32>
    %27 = arith.cmpf ogt, %25, %26 : vector<1x512xf32>
    %cst_21 = arith.constant 0.000000e+00 : f32
    %28 = vector.shape_cast %27 : vector<1x512xi1> to vector<1x512xi1>
    %29 = vector.broadcast %28 : vector<1x512xi1> to vector<4x512xi1>
    %30 = vector.broadcast %cst_21 : f32 to vector<4x512xf32>
    %31 = arith.select %29, %24, %30 : vector<4x512xi1>, vector<4x512xf32>
    %c8 = arith.constant 8 : index
    %c0_22 = arith.constant 0 : index
    %32 = vector.load %arg8[%c8, %c0_22] : memref<37x512xf32, #tpu.memory_space<vmem>>, vector<4x512xf32>
    tpu.vector_store %arg8[%c8, %c0_22], %31 {strides = array<i32>} : memref<37x512xf32, #tpu.memory_space<vmem>>, vector<4x512xf32>,
    %c0_23 = arith.constant 0 : index
    %c127 = arith.constant 127 : index
    %33 = vector.load %arg7[%c0_23, %c127] : memref<4x768xf32, #tpu.memory_space<vmem>>, vector<4x512xf32>
    %c3 = arith.constant 3 : index
    %c0_24 = arith.constant 0 : index
    %34 = vector.load %arg3[%c3, %c0_24] : memref<9x512xf32, #tpu.memory_space<vmem>>, vector<1x512xf32>
    %cst_25 = arith.constant 5.000000e-01 : f32
    %35 = vector.broadcast %cst_25 : f32 to vector<1x512xf32>
    %36 = arith.cmpf ogt, %34, %35 : vector<1x512xf32>
    %cst_26 = arith.constant 0.000000e+00 : f32
    %37 = vector.shape_cast %36 : vector<1x512xi1> to vector<1x512xi1>
    %38 = vector.broadcast %37 : vector<1x512xi1> to vector<4x512xi1>
    %39 = vector.broadcast %cst_26 : f32 to vector<4x512xf32>
    %40 = arith.select %38, %33, %39 : vector<4x512xi1>, vector<4x512xf32>
    %c12 = arith.constant 12 : index
    %c0_27 = arith.constant 0 : index
    %41 = vector.load %arg8[%c12, %c0_27] : memref<37x512xf32, #tpu.memory_space<vmem>>, vector<4x512xf32>
    tpu.vector_store %arg8[%c12, %c0_27], %40 {strides = array<i32>} : memref<37x512xf32, #tpu.memory_space<vmem>>, vector<4x512xf32>,
    %c0_28 = arith.constant 0 : index
    %c128_29 = arith.constant 128 : index
    %42 = vector.load %arg7[%c0_28, %c128_29] : memref<4x768xf32, #tpu.memory_space<vmem>>, vector<4x512xf32>
    %c4_30 = arith.constant 4 : index
    %c0_31 = arith.constant 0 : index
    %43 = vector.load %arg3[%c4_30, %c0_31] : memref<9x512xf32, #tpu.memory_space<vmem>>, vector<1x512xf32>
    %cst_32 = arith.constant 5.000000e-01 : f32
    %44 = vector.broadcast %cst_32 : f32 to vector<1x512xf32>
    %45 = arith.cmpf ogt, %43, %44 : vector<1x512xf32>
    %cst_33 = arith.constant 0.000000e+00 : f32
    %46 = vector.shape_cast %45 : vector<1x512xi1> to vector<1x512xi1>
    %47 = vector.broadcast %46 : vector<1x512xi1> to vector<4x512xi1>
    %48 = vector.broadcast %cst_33 : f32 to vector<4x512xf32>
    %49 = arith.select %47, %42, %48 : vector<4x512xi1>, vector<4x512xf32>
    %c16 = arith.constant 16 : index
    %c0_34 = arith.constant 0 : index
    %50 = vector.load %arg8[%c16, %c0_34] : memref<37x512xf32, #tpu.memory_space<vmem>>, vector<4x512xf32>
    tpu.vector_store %arg8[%c16, %c0_34], %49 {strides = array<i32>} : memref<37x512xf32, #tpu.memory_space<vmem>>, vector<4x512xf32>,
    %c0_35 = arith.constant 0 : index
    %c129 = arith.constant 129 : index
    %51 = vector.load %arg7[%c0_35, %c129] : memref<4x768xf32, #tpu.memory_space<vmem>>, vector<4x512xf32>
    %c5 = arith.constant 5 : index
    %c0_36 = arith.constant 0 : index
    %52 = vector.load %arg3[%c5, %c0_36] : memref<9x512xf32, #tpu.memory_space<vmem>>, vector<1x512xf32>
    %cst_37 = arith.constant 5.000000e-01 : f32
    %53 = vector.broadcast %cst_37 : f32 to vector<1x512xf32>
    %54 = arith.cmpf ogt, %52, %53 : vector<1x512xf32>
    %cst_38 = arith.constant 0.000000e+00 : f32
    %55 = vector.shape_cast %54 : vector<1x512xi1> to vector<1x512xi1>
    %56 = vector.broadcast %55 : vector<1x512xi1> to vector<4x512xi1>
    %57 = vector.broadcast %cst_38 : f32 to vector<4x512xf32>
    %58 = arith.select %56, %51, %57 : vector<4x512xi1>, vector<4x512xf32>
    %c20 = arith.constant 20 : index
    %c0_39 = arith.constant 0 : index
    %59 = vector.load %arg8[%c20, %c0_39] : memref<37x512xf32, #tpu.memory_space<vmem>>, vector<4x512xf32>
    tpu.vector_store %arg8[%c20, %c0_39], %58 {strides = array<i32>} : memref<37x512xf32, #tpu.memory_space<vmem>>, vector<4x512xf32>,
    %c0_40 = arith.constant 0 : index
    %c143 = arith.constant 143 : index
    %60 = vector.load %arg7[%c0_40, %c143] : memref<4x768xf32, #tpu.memory_space<vmem>>, vector<4x512xf32>
    %c6 = arith.constant 6 : index
    %c0_41 = arith.constant 0 : index
    %61 = vector.load %arg3[%c6, %c0_41] : memref<9x512xf32, #tpu.memory_space<vmem>>, vector<1x512xf32>
    %cst_42 = arith.constant 5.000000e-01 : f32
    %62 = vector.broadcast %cst_42 : f32 to vector<1x512xf32>
    %63 = arith.cmpf ogt, %61, %62 : vector<1x512xf32>
    %cst_43 = arith.constant 0.000000e+00 : f32
    %64 = vector.shape_cast %63 : vector<1x512xi1> to vector<1x512xi1>
    %65 = vector.broadcast %64 : vector<1x512xi1> to vector<4x512xi1>
    %66 = vector.broadcast %cst_43 : f32 to vector<4x512xf32>
    %67 = arith.select %65, %60, %66 : vector<4x512xi1>, vector<4x512xf32>
    %c24 = arith.constant 24 : index
    %c0_44 = arith.constant 0 : index
    %68 = vector.load %arg8[%c24, %c0_44] : memref<37x512xf32, #tpu.memory_space<vmem>>, vector<4x512xf32>
    tpu.vector_store %arg8[%c24, %c0_44], %67 {strides = array<i32>} : memref<37x512xf32, #tpu.memory_space<vmem>>, vector<4x512xf32>,
    %c0_45 = arith.constant 0 : index
    %c144 = arith.constant 144 : index
    %69 = vector.load %arg7[%c0_45, %c144] : memref<4x768xf32, #tpu.memory_space<vmem>>, vector<4x512xf32>
    %c7 = arith.constant 7 : index
    %c0_46 = arith.constant 0 : index
    %70 = vector.load %arg3[%c7, %c0_46] : memref<9x512xf32, #tpu.memory_space<vmem>>, vector<1x512xf32>
    %cst_47 = arith.constant 5.000000e-01 : f32
    %71 = vector.broadcast %cst_47 : f32 to vector<1x512xf32>
    %72 = arith.cmpf ogt, %70, %71 : vector<1x512xf32>
    %cst_48 = arith.constant 0.000000e+00 : f32
    %73 = vector.shape_cast %72 : vector<1x512xi1> to vector<1x512xi1>
    %74 = vector.broadcast %73 : vector<1x512xi1> to vector<4x512xi1>
    %75 = vector.broadcast %cst_48 : f32 to vector<4x512xf32>
    %76 = arith.select %74, %69, %75 : vector<4x512xi1>, vector<4x512xf32>
    %c28 = arith.constant 28 : index
    %c0_49 = arith.constant 0 : index
    %77 = vector.load %arg8[%c28, %c0_49] : memref<37x512xf32, #tpu.memory_space<vmem>>, vector<4x512xf32>
    tpu.vector_store %arg8[%c28, %c0_49], %76 {strides = array<i32>} : memref<37x512xf32, #tpu.memory_space<vmem>>, vector<4x512xf32>,
    %c0_50 = arith.constant 0 : index
    %c145 = arith.constant 145 : index
    %78 = vector.load %arg7[%c0_50, %c145] : memref<4x768xf32, #tpu.memory_space<vmem>>, vector<4x512xf32>
    %c8_51 = arith.constant 8 : index
    %c0_52 = arith.constant 0 : index
    %79 = vector.load %arg3[%c8_51, %c0_52] : memref<9x512xf32, #tpu.memory_space<vmem>>, vector<1x512xf32>
    %cst_53 = arith.constant 5.000000e-01 : f32
    %80 = vector.broadcast %cst_53 : f32 to vector<1x512xf32>
    %81 = arith.cmpf ogt, %79, %80 : vector<1x512xf32>
    %cst_54 = arith.constant 0.000000e+00 : f32
    %82 = vector.shape_cast %81 : vector<1x512xi1> to vector<1x512xi1>
    %83 = vector.broadcast %82 : vector<1x512xi1> to vector<4x512xi1>
    %84 = vector.broadcast %cst_54 : f32 to vector<4x512xf32>
    %85 = arith.select %83, %78, %84 : vector<4x512xi1>, vector<4x512xf32>
    %c32 = arith.constant 32 : index
    %c0_55 = arith.constant 0 : index
    %86 = vector.load %arg8[%c32, %c0_55] : memref<37x512xf32, #tpu.memory_space<vmem>>, vector<4x512xf32>
    tpu.vector_store %arg8[%c32, %c0_55], %85 {strides = array<i32>} : memref<37x512xf32, #tpu.memory_space<vmem>>, vector<4x512xf32>,
    %cst_56 = arith.constant 1.000000e+00 : f32
    %87 = vector.broadcast %cst_56 : f32 to vector<1x512xf32>
    %c36 = arith.constant 36 : index
    %c0_57 = arith.constant 0 : index
    %88 = vector.load %arg8[%c36, %c0_57] : memref<37x512xf32, #tpu.memory_space<vmem>>, vector<1x512xf32>
    tpu.vector_store %arg8[%c36, %c0_57], %87 {strides = array<i32>} : memref<37x512xf32, #tpu.memory_space<vmem>>, vector<1x512xf32>,
    %c0_58 = arith.constant 0 : index
    %c0_59 = arith.constant 0 : index
    %89 = vector.load %arg2[%c0_58, %c0_59] : memref<4x37xf32, #tpu.memory_space<vmem>>, vector<4x37xf32>
    %c0_60 = arith.constant 0 : index
    %c0_61 = arith.constant 0 : index
    %90 = vector.load %arg8[%c0_60, %c0_61] : memref<37x512xf32, #tpu.memory_space<vmem>>, vector<37x512xf32>
    %cst_62 = arith.constant dense<0.000000e+00> : vector<4x512xf32>
    %91 = tpu.matmul %89, %90, %cst_62 {dimension_numbers = #tpu.dot_dimension_numbers<[1], [0], [0], [1], [0, 0, 1, 1], [], []>} : vector<4x37xf32>, vector<37x512xf32>, vector<4x512xf32> -> vector<4x512xf32>
    %cst_63 = arith.constant 0.000000e+00 : f32
    %92 = vector.broadcast %cst_63 : f32 to vector<4x512xf32>
    %93 = arith.maximumf %91, %92 : vector<4x512xf32>
    %c0_64 = arith.constant 0 : index
    %c128_65 = arith.constant 128 : index
    %94 = vector.load %arg7[%c0_64, %c128_65] : memref<4x768xf32, #tpu.memory_space<vmem>>, vector<4x512xf32>
    tpu.vector_store %arg7[%c0_64, %c128_65], %93 {strides = array<i32>} : memref<4x768xf32, #tpu.memory_space<vmem>>, vector<4x512xf32>,
    %c0_66 = arith.constant 0 : index
    %c111_67 = arith.constant 111 : index
    %95 = vector.load %arg7[%c0_66, %c111_67] : memref<4x768xf32, #tpu.memory_space<vmem>>, vector<4x512xf32>
    %c0_68 = arith.constant 0 : index
    %c0_69 = arith.constant 0 : index
    %96 = vector.load %arg5[%c0_68, %c0_69] : memref<9x512xf32, #tpu.memory_space<vmem>>, vector<1x512xf32>
    %cst_70 = arith.constant 5.000000e-01 : f32
    %97 = vector.broadcast %cst_70 : f32 to vector<1x512xf32>
    %98 = arith.cmpf ogt, %96, %97 : vector<1x512xf32>
    %cst_71 = arith.constant 0.000000e+00 : f32
    %99 = vector.shape_cast %98 : vector<1x512xi1> to vector<1x512xi1>
    %100 = vector.broadcast %99 : vector<1x512xi1> to vector<4x512xi1>
    %101 = vector.broadcast %cst_71 : f32 to vector<4x512xf32>
    %102 = arith.select %100, %95, %101 : vector<4x512xi1>, vector<4x512xf32>
    %c0_72 = arith.constant 0 : index
    %c0_73 = arith.constant 0 : index
    %103 = vector.load %arg8[%c0_72, %c0_73] : memref<37x512xf32, #tpu.memory_space<vmem>>, vector<4x512xf32>
    tpu.vector_store %arg8[%c0_72, %c0_73], %102 {strides = array<i32>} : memref<37x512xf32, #tpu.memory_space<vmem>>, vector<4x512xf32>,
    %c0_74 = arith.constant 0 : index
    %c112_75 = arith.constant 112 : index
    %104 = vector.load %arg7[%c0_74, %c112_75] : memref<4x768xf32, #tpu.memory_space<vmem>>, vector<4x512xf32>
    %c1_76 = arith.constant 1 : index
    %c0_77 = arith.constant 0 : index
    %105 = vector.load %arg5[%c1_76, %c0_77] : memref<9x512xf32, #tpu.memory_space<vmem>>, vector<1x512xf32>
    %cst_78 = arith.constant 5.000000e-01 : f32
    %106 = vector.broadcast %cst_78 : f32 to vector<1x512xf32>
    %107 = arith.cmpf ogt, %105, %106 : vector<1x512xf32>
    %cst_79 = arith.constant 0.000000e+00 : f32
    %108 = vector.shape_cast %107 : vector<1x512xi1> to vector<1x512xi1>
    %109 = vector.broadcast %108 : vector<1x512xi1> to vector<4x512xi1>
    %110 = vector.broadcast %cst_79 : f32 to vector<4x512xf32>
    %111 = arith.select %109, %104, %110 : vector<4x512xi1>, vector<4x512xf32>
    %c4_80 = arith.constant 4 : index
    %c0_81 = arith.constant 0 : index
    %112 = vector.load %arg8[%c4_80, %c0_81] : memref<37x512xf32, #tpu.memory_space<vmem>>, vector<4x512xf32>
    tpu.vector_store %arg8[%c4_80, %c0_81], %111 {strides = array<i32>} : memref<37x512xf32, #tpu.memory_space<vmem>>, vector<4x512xf32>,
    %c0_82 = arith.constant 0 : index
    %c113_83 = arith.constant 113 : index
    %113 = vector.load %arg7[%c0_82, %c113_83] : memref<4x768xf32, #tpu.memory_space<vmem>>, vector<4x512xf32>
    %c2_84 = arith.constant 2 : index
    %c0_85 = arith.constant 0 : index
    %114 = vector.load %arg5[%c2_84, %c0_85] : memref<9x512xf32, #tpu.memory_space<vmem>>, vector<1x512xf32>
    %cst_86 = arith.constant 5.000000e-01 : f32
    %115 = vector.broadcast %cst_86 : f32 to vector<1x512xf32>
    %116 = arith.cmpf ogt, %114, %115 : vector<1x512xf32>
    %cst_87 = arith.constant 0.000000e+00 : f32
    %117 = vector.shape_cast %116 : vector<1x512xi1> to vector<1x512xi1>
    %118 = vector.broadcast %117 : vector<1x512xi1> to vector<4x512xi1>
    %119 = vector.broadcast %cst_87 : f32 to vector<4x512xf32>
    %120 = arith.select %118, %113, %119 : vector<4x512xi1>, vector<4x512xf32>
    %c8_88 = arith.constant 8 : index
    %c0_89 = arith.constant 0 : index
    %121 = vector.load %arg8[%c8_88, %c0_89] : memref<37x512xf32, #tpu.memory_space<vmem>>, vector<4x512xf32>
    tpu.vector_store %arg8[%c8_88, %c0_89], %120 {strides = array<i32>} : memref<37x512xf32, #tpu.memory_space<vmem>>, vector<4x512xf32>,
    %c0_90 = arith.constant 0 : index
    %c127_91 = arith.constant 127 : index
    %122 = vector.load %arg7[%c0_90, %c127_91] : memref<4x768xf32, #tpu.memory_space<vmem>>, vector<4x512xf32>
    %c3_92 = arith.constant 3 : index
    %c0_93 = arith.constant 0 : index
    %123 = vector.load %arg5[%c3_92, %c0_93] : memref<9x512xf32, #tpu.memory_space<vmem>>, vector<1x512xf32>
    %cst_94 = arith.constant 5.000000e-01 : f32
    %124 = vector.broadcast %cst_94 : f32 to vector<1x512xf32>
    %125 = arith.cmpf ogt, %123, %124 : vector<1x512xf32>
    %cst_95 = arith.constant 0.000000e+00 : f32
    %126 = vector.shape_cast %125 : vector<1x512xi1> to vector<1x512xi1>
    %127 = vector.broadcast %126 : vector<1x512xi1> to vector<4x512xi1>
    %128 = vector.broadcast %cst_95 : f32 to vector<4x512xf32>
    %129 = arith.select %127, %122, %128 : vector<4x512xi1>, vector<4x512xf32>
    %c12_96 = arith.constant 12 : index
    %c0_97 = arith.constant 0 : index
    %130 = vector.load %arg8[%c12_96, %c0_97] : memref<37x512xf32, #tpu.memory_space<vmem>>, vector<4x512xf32>
    tpu.vector_store %arg8[%c12_96, %c0_97], %129 {strides = array<i32>} : memref<37x512xf32, #tpu.memory_space<vmem>>, vector<4x512xf32>,
    %c0_98 = arith.constant 0 : index
    %c128_99 = arith.constant 128 : index
    %131 = vector.load %arg7[%c0_98, %c128_99] : memref<4x768xf32, #tpu.memory_space<vmem>>, vector<4x512xf32>
    %c4_100 = arith.constant 4 : index
    %c0_101 = arith.constant 0 : index
    %132 = vector.load %arg5[%c4_100, %c0_101] : memref<9x512xf32, #tpu.memory_space<vmem>>, vector<1x512xf32>
    %cst_102 = arith.constant 5.000000e-01 : f32
    %133 = vector.broadcast %cst_102 : f32 to vector<1x512xf32>
    %134 = arith.cmpf ogt, %132, %133 : vector<1x512xf32>
    %cst_103 = arith.constant 0.000000e+00 : f32
    %135 = vector.shape_cast %134 : vector<1x512xi1> to vector<1x512xi1>
    %136 = vector.broadcast %135 : vector<1x512xi1> to vector<4x512xi1>
    %137 = vector.broadcast %cst_103 : f32 to vector<4x512xf32>
    %138 = arith.select %136, %131, %137 : vector<4x512xi1>, vector<4x512xf32>
    %c16_104 = arith.constant 16 : index
    %c0_105 = arith.constant 0 : index
    %139 = vector.load %arg8[%c16_104, %c0_105] : memref<37x512xf32, #tpu.memory_space<vmem>>, vector<4x512xf32>
    tpu.vector_store %arg8[%c16_104, %c0_105], %138 {strides = array<i32>} : memref<37x512xf32, #tpu.memory_space<vmem>>, vector<4x512xf32>,
    %c0_106 = arith.constant 0 : index
    %c129_107 = arith.constant 129 : index
    %140 = vector.load %arg7[%c0_106, %c129_107] : memref<4x768xf32, #tpu.memory_space<vmem>>, vector<4x512xf32>
    %c5_108 = arith.constant 5 : index
    %c0_109 = arith.constant 0 : index
    %141 = vector.load %arg5[%c5_108, %c0_109] : memref<9x512xf32, #tpu.memory_space<vmem>>, vector<1x512xf32>
    %cst_110 = arith.constant 5.000000e-01 : f32
    %142 = vector.broadcast %cst_110 : f32 to vector<1x512xf32>
    %143 = arith.cmpf ogt, %141, %142 : vector<1x512xf32>
    %cst_111 = arith.constant 0.000000e+00 : f32
    %144 = vector.shape_cast %143 : vector<1x512xi1> to vector<1x512xi1>
    %145 = vector.broadcast %144 : vector<1x512xi1> to vector<4x512xi1>
    %146 = vector.broadcast %cst_111 : f32 to vector<4x512xf32>
    %147 = arith.select %145, %140, %146 : vector<4x512xi1>, vector<4x512xf32>
    %c20_112 = arith.constant 20 : index
    %c0_113 = arith.constant 0 : index
    %148 = vector.load %arg8[%c20_112, %c0_113] : memref<37x512xf32, #tpu.memory_space<vmem>>, vector<4x512xf32>
    tpu.vector_store %arg8[%c20_112, %c0_113], %147 {strides = array<i32>} : memref<37x512xf32, #tpu.memory_space<vmem>>, vector<4x512xf32>,
    %c0_114 = arith.constant 0 : index
    %c143_115 = arith.constant 143 : index
    %149 = vector.load %arg7[%c0_114, %c143_115] : memref<4x768xf32, #tpu.memory_space<vmem>>, vector<4x512xf32>
    %c6_116 = arith.constant 6 : index
    %c0_117 = arith.constant 0 : index
    %150 = vector.load %arg5[%c6_116, %c0_117] : memref<9x512xf32, #tpu.memory_space<vmem>>, vector<1x512xf32>
    %cst_118 = arith.constant 5.000000e-01 : f32
    %151 = vector.broadcast %cst_118 : f32 to vector<1x512xf32>
    %152 = arith.cmpf ogt, %150, %151 : vector<1x512xf32>
    %cst_119 = arith.constant 0.000000e+00 : f32
    %153 = vector.shape_cast %152 : vector<1x512xi1> to vector<1x512xi1>
    %154 = vector.broadcast %153 : vector<1x512xi1> to vector<4x512xi1>
    %155 = vector.broadcast %cst_119 : f32 to vector<4x512xf32>
    %156 = arith.select %154, %149, %155 : vector<4x512xi1>, vector<4x512xf32>
    %c24_120 = arith.constant 24 : index
    %c0_121 = arith.constant 0 : index
    %157 = vector.load %arg8[%c24_120, %c0_121] : memref<37x512xf32, #tpu.memory_space<vmem>>, vector<4x512xf32>
    tpu.vector_store %arg8[%c24_120, %c0_121], %156 {strides = array<i32>} : memref<37x512xf32, #tpu.memory_space<vmem>>, vector<4x512xf32>,
    %c0_122 = arith.constant 0 : index
    %c144_123 = arith.constant 144 : index
    %158 = vector.load %arg7[%c0_122, %c144_123] : memref<4x768xf32, #tpu.memory_space<vmem>>, vector<4x512xf32>
    %c7_124 = arith.constant 7 : index
    %c0_125 = arith.constant 0 : index
    %159 = vector.load %arg5[%c7_124, %c0_125] : memref<9x512xf32, #tpu.memory_space<vmem>>, vector<1x512xf32>
    %cst_126 = arith.constant 5.000000e-01 : f32
    %160 = vector.broadcast %cst_126 : f32 to vector<1x512xf32>
    %161 = arith.cmpf ogt, %159, %160 : vector<1x512xf32>
    %cst_127 = arith.constant 0.000000e+00 : f32
    %162 = vector.shape_cast %161 : vector<1x512xi1> to vector<1x512xi1>
    %163 = vector.broadcast %162 : vector<1x512xi1> to vector<4x512xi1>
    %164 = vector.broadcast %cst_127 : f32 to vector<4x512xf32>
    %165 = arith.select %163, %158, %164 : vector<4x512xi1>, vector<4x512xf32>
    %c28_128 = arith.constant 28 : index
    %c0_129 = arith.constant 0 : index
    %166 = vector.load %arg8[%c28_128, %c0_129] : memref<37x512xf32, #tpu.memory_space<vmem>>, vector<4x512xf32>
    tpu.vector_store %arg8[%c28_128, %c0_129], %165 {strides = array<i32>} : memref<37x512xf32, #tpu.memory_space<vmem>>, vector<4x512xf32>,
    %c0_130 = arith.constant 0 : index
    %c145_131 = arith.constant 145 : index
    %167 = vector.load %arg7[%c0_130, %c145_131] : memref<4x768xf32, #tpu.memory_space<vmem>>, vector<4x512xf32>
    %c8_132 = arith.constant 8 : index
    %c0_133 = arith.constant 0 : index
    %168 = vector.load %arg5[%c8_132, %c0_133] : memref<9x512xf32, #tpu.memory_space<vmem>>, vector<1x512xf32>
    %cst_134 = arith.constant 5.000000e-01 : f32
    %169 = vector.broadcast %cst_134 : f32 to vector<1x512xf32>
    %170 = arith.cmpf ogt, %168, %169 : vector<1x512xf32>
    %cst_135 = arith.constant 0.000000e+00 : f32
    %171 = vector.shape_cast %170 : vector<1x512xi1> to vector<1x512xi1>
    %172 = vector.broadcast %171 : vector<1x512xi1> to vector<4x512xi1>
    %173 = vector.broadcast %cst_135 : f32 to vector<4x512xf32>
    %174 = arith.select %172, %167, %173 : vector<4x512xi1>, vector<4x512xf32>
    %c32_136 = arith.constant 32 : index
    %c0_137 = arith.constant 0 : index
    %175 = vector.load %arg8[%c32_136, %c0_137] : memref<37x512xf32, #tpu.memory_space<vmem>>, vector<4x512xf32>
    tpu.vector_store %arg8[%c32_136, %c0_137], %174 {strides = array<i32>} : memref<37x512xf32, #tpu.memory_space<vmem>>, vector<4x512xf32>,
    %cst_138 = arith.constant 1.000000e+00 : f32
    %176 = vector.broadcast %cst_138 : f32 to vector<1x512xf32>
    %c36_139 = arith.constant 36 : index
    %c0_140 = arith.constant 0 : index
    %177 = vector.load %arg8[%c36_139, %c0_140] : memref<37x512xf32, #tpu.memory_space<vmem>>, vector<1x512xf32>
    tpu.vector_store %arg8[%c36_139, %c0_140], %176 {strides = array<i32>} : memref<37x512xf32, #tpu.memory_space<vmem>>, vector<1x512xf32>,
    %c0_141 = arith.constant 0 : index
    %c0_142 = arith.constant 0 : index
    %178 = vector.load %arg4[%c0_141, %c0_142] : memref<4x37xf32, #tpu.memory_space<vmem>>, vector<4x37xf32>
    %c0_143 = arith.constant 0 : index
    %c0_144 = arith.constant 0 : index
    %179 = vector.load %arg8[%c0_143, %c0_144] : memref<37x512xf32, #tpu.memory_space<vmem>>, vector<37x512xf32>
    %cst_145 = arith.constant dense<0.000000e+00> : vector<4x512xf32>
    %180 = tpu.matmul %178, %179, %cst_145 {dimension_numbers = #tpu.dot_dimension_numbers<[1], [0], [0], [1], [0, 0, 1, 1], [], []>} : vector<4x37xf32>, vector<37x512xf32>, vector<4x512xf32> -> vector<4x512xf32>
    %cst_146 = arith.constant 0.000000e+00 : f32
    %181 = vector.broadcast %cst_146 : f32 to vector<4x512xf32>
    %182 = arith.maximumf %180, %181 : vector<4x512xf32>
    %183 = vector.extract_strided_slice %182 {offsets = [0, 0], sizes = [4, 256], strides = [1, 1]} : vector<4x512xf32> to vector<4x256xf32>
    %c0_147 = arith.constant 0 : index
    %c0_148 = arith.constant 0 : index
    %c0_149 = arith.constant 0 : index
    %184 = vector.load %arg1[%c0_147, %c0_148, %c0_149] : memref<2x4x256xf32, #tpu.memory_space<vmem>>, vector<1x4x256xf32>
    %185 = vector.shape_cast %184 : vector<1x4x256xf32> to vector<4x256xf32>
    %186 = arith.addf %183, %185 : vector<4x256xf32>
    %cst_150 = arith.constant 0.000000e+00 : f32
    %187 = vector.broadcast %cst_150 : f32 to vector<4x256xf32>
    %188 = arith.maximumf %186, %187 : vector<4x256xf32>
    %c0_151 = arith.constant 0 : index
    %c0_152 = arith.constant 0 : index
    %c0_153 = arith.constant 0 : index
    %189 = vector.load %arg6[%c0_151, %c0_152, %c0_153] : memref<2x4x256xf32, #tpu.memory_space<vmem>>, vector<1x4x256xf32>
    %190 = vector.shape_cast %189 : vector<1x4x256xf32> to vector<4x256xf32>
    %191 = vector.shape_cast %188 : vector<4x256xf32> to vector<1x4x256xf32>
    tpu.vector_store %arg6[%c0_151, %c0_152, %c0_153], %191 {strides = array<i32>} : memref<2x4x256xf32, #tpu.memory_space<vmem>>, vector<1x4x256xf32>,
    %192 = vector.extract_strided_slice %182 {offsets = [0, 256], sizes = [4, 256], strides = [1, 1]} : vector<4x512xf32> to vector<4x256xf32>
    %c1_154 = arith.constant 1 : index
    %c0_155 = arith.constant 0 : index
    %c0_156 = arith.constant 0 : index
    %193 = vector.load %arg1[%c1_154, %c0_155, %c0_156] : memref<2x4x256xf32, #tpu.memory_space<vmem>>, vector<1x4x256xf32>
    %194 = vector.shape_cast %193 : vector<1x4x256xf32> to vector<4x256xf32>
    %195 = arith.addf %192, %194 : vector<4x256xf32>
    %cst_157 = arith.constant 0.000000e+00 : f32
    %196 = vector.broadcast %cst_157 : f32 to vector<4x256xf32>
    %197 = arith.maximumf %195, %196 : vector<4x256xf32>
    %c1_158 = arith.constant 1 : index
    %c0_159 = arith.constant 0 : index
    %c0_160 = arith.constant 0 : index
    %198 = vector.load %arg6[%c1_158, %c0_159, %c0_160] : memref<2x4x256xf32, #tpu.memory_space<vmem>>, vector<1x4x256xf32>
    %199 = vector.shape_cast %198 : vector<1x4x256xf32> to vector<4x256xf32>
    %200 = vector.shape_cast %197 : vector<4x256xf32> to vector<1x4x256xf32>
    tpu.vector_store %arg6[%c1_158, %c0_159, %c0_160], %200 {strides = array<i32>} : memref<2x4x256xf32, #tpu.memory_space<vmem>>, vector<1x4x256xf32>,
    return
  }
  func.func @transform_0(%arg0: i32) -> (i32, i32, i32) {
    %c0_i32 = arith.constant 0 : i32
    %c0_i32_0 = arith.constant 0 : i32
    %c0_i32_1 = arith.constant 0 : i32
    return %arg0, %c0_i32, %c0_i32_0 : i32, i32, i32
  }
  func.func @transform_1(%arg0: i32) -> (i32, i32) {
    %c0_i32 = arith.constant 0 : i32
    %c0_i32_0 = arith.constant 0 : i32
    %c0_i32_1 = arith.constant 0 : i32
    return %c0_i32, %c0_i32_0 : i32, i32
  }
  func.func @transform_2(%arg0: i32) -> (i32, i32) {
    %c0_i32 = arith.constant 0 : i32
    %c0_i32_0 = arith.constant 0 : i32
    %c0_i32_1 = arith.constant 0 : i32
    return %c0_i32, %c0_i32_0 : i32, i32
  }
  func.func @transform_3(%arg0: i32) -> (i32, i32) {
    %c0_i32 = arith.constant 0 : i32
    %c0_i32_0 = arith.constant 0 : i32
    %c0_i32_1 = arith.constant 0 : i32
    return %c0_i32, %c0_i32_0 : i32, i32
  }
  func.func @transform_4(%arg0: i32) -> (i32, i32) {
    %c0_i32 = arith.constant 0 : i32
    %c0_i32_0 = arith.constant 0 : i32
    %c0_i32_1 = arith.constant 0 : i32
    return %c0_i32, %c0_i32_0 : i32, i32
  }
  func.func @transform_5(%arg0: i32) -> (i32, i32, i32) {
    %c0_i32 = arith.constant 0 : i32
    %c0_i32_0 = arith.constant 0 : i32
    %c0_i32_1 = arith.constant 0 : i32
    return %arg0, %c0_i32, %c0_i32_0 : i32, i32, i32
  }
}

</mosaic_0001>

<llo_original>
// kernel: tpu_custom_call.1
$region0: #{tpu_custom_call.1}
  #allocation0 [shape = 'u32[]', space=smem, size = 0x4, offset = 0x4, fixed_abs, tag = 'smem constant byte address 0x4 - core index']
  #allocation1 [shape = 'u32[144,128]{1,0:T(1,128)}', space=vmem, size = 0x12000, scoped, tag = 'internal scratch']
  #allocation2 [shape = 'f32[4,768]{1,0:T(4,128)}', space=vmem, size = 0x3000, scoped, tag = 'scratch operand']
  #allocation3 [shape = 'f32[37,512]{1,0:T(8,128)}', space=vmem, size = 0x14000, scoped, tag = 'scratch operand']
  %s0 = inlined_call_operand.hbm [shape: f32[2,4,256], index: 0, kind: input, shape index: {}]
  %s1 = inlined_call_operand.hbm [shape: f32[4,37], index: 1, kind: input, shape index: {}]
  %s2 = inlined_call_operand.hbm [shape: f32[9,512], index: 2, kind: input, shape index: {}]
  %s3 = inlined_call_operand.vmem [shape: f32[4,37], index: 3, kind: input, shape index: {}]
  %s4 = inlined_call_operand.hbm [shape: f32[9,512], index: 4, kind: input, shape index: {}]
  %s5 = inlined_call_operand.hbm [shape: f32[2,4,256], index: 5, kind: output, shape index: {}]
  %s6 = sld [smem:[#allocation0]]
  $region46: #{tpu_custom_call.1} parent=0
    _
  %s8 = ssub.s32 1, %s6
  %s9 = scalar_select 0, %s8, %s6
  $region1: #{tpu_custom_call.1} parent=0
    #allocation4 [shape = 'u8[8192]{0}', space=vmem, size = 0x2000, scoped, tag = 'input window, operand 0, single buffered']
    #allocation5 [shape = 's32[1]{0}', space=sflag, size = 0x4, scoped, tag = 'scoped memory for tpu_custom_call.1']
    #allocation6 [shape = 's32[1]{0}', space=sflag, size = 0x4, scoped, tag = 'scoped memory for tpu_custom_call.1']
    #allocation7 [shape = 'u8[2048]{0}', space=vmem, size = 0x800, scoped, tag = 'input window, operand 1, single buffered']
    #allocation8 [shape = 's32[1]{0}', space=sflag, size = 0x4, scoped, tag = 'scoped memory for tpu_custom_call.1']
    #allocation9 [shape = 'u8[32768]{0}', space=vmem, size = 0x8000, scoped, tag = 'input window, operand 2, single buffered']
    #allocation10 [shape = 'u8[32768]{0}', space=vmem, size = 0x8000, scoped, tag = 'input window, operand 4, single buffered']
    #allocation11 [shape = 's32[1]{0}', space=sflag, size = 0x4, scoped, tag = 'scoped memory for tpu_custom_call.1']
    #allocation12 [shape = 'u8[8192]{0}', space=vmem, size = 0x2000, scoped, tag = 'output window, operand 0, single buffered']
    %10 = vsyncpa [#allocation5], 0
    %11 = vsyncpa [#allocation8], 0
    %12 = vsyncpa [#allocation11], 0
    %13 = vsyncpa [#allocation6], 0
    // Predicated region
    $region2: #{tpu_custom_call.1} parent=1 // pred_check
      _
    $region3: #{tpu_custom_call.1} parent=1 // pred_check_branch
      %15 = sbr.rel (0) target = $region5
    $region4: #{tpu_custom_call.1} parent=1 // pred_region
      %s17 = ssub.s32 256, 256
      %18 = vsyncadd [#allocation5], %s17
      %s19 = sshll.u32 [#allocation4], 4
      %s20 = int_to_ptr.vmem [resolvable:$true] %s19
      %25 = dma.hbm_to_vmem [thread:$0]  %s0, 256, %s20, [#allocation5], 128, 128, 8
    $region5: #{tpu_custom_call.1} parent=1 // pred_fallthru
      _
    // Predicated region
    $region6: #{tpu_custom_call.1} parent=1 // pred_check
      _
    $region7: #{tpu_custom_call.1} parent=1 // pred_check_branch
      %27 = sbr.rel (0) target = $region9
    $region8: #{tpu_custom_call.1} parent=1 // pred_region
      %s29 = ssub.s32 64, 64
      %30 = vsyncadd [#allocation8], %s29
      %s32 = sshll.u32 [#allocation7], 4
      %s33 = int_to_ptr.vmem [resolvable:$true] %s32
      %35 = dma.hbm_to_vmem [thread:$0]  %s1, 64, %s33, [#allocation8]
    $region9: #{tpu_custom_call.1} parent=1 // pred_fallthru
      _
    // Predicated region
    $region10: #{tpu_custom_call.1} parent=1 // pred_check
      _
    $region11: #{tpu_custom_call.1} parent=1 // pred_check_branch
      %37 = sbr.rel (0) target = $region13
    $region12: #{tpu_custom_call.1} parent=1 // pred_region
      %s39 = ssub.s32 1024, 1024
      %40 = vsyncadd [#allocation8], %s39
      %s41 = sshll.u32 [#allocation9], 4
      %s42 = int_to_ptr.vmem [resolvable:$true] %s41
      %47 = dma.hbm_to_vmem [thread:$0]  %s2, 1024, %s42, [#allocation8], 512, 512, 32
    $region13: #{tpu_custom_call.1} parent=1 // pred_fallthru
      _
    // Predicated region
    $region14: #{tpu_custom_call.1} parent=1 // pred_check
      _
    $region15: #{tpu_custom_call.1} parent=1 // pred_check_branch
      %49 = sbr.rel (0) target = $region17
    $region16: #{tpu_custom_call.1} parent=1 // pred_region
      _
    $region17: #{tpu_custom_call.1} parent=1 // pred_fallthru
      _
    // Predicated region
    $region18: #{tpu_custom_call.1} parent=1 // pred_check
      _
    $region19: #{tpu_custom_call.1} parent=1 // pred_check_branch
      %51 = sbr.rel (0) target = $region21
    $region20: #{tpu_custom_call.1} parent=1 // pred_region
      %s53 = ssub.s32 1024, 1024
      %54 = vsyncadd [#allocation11], %s53
      %s55 = sshll.u32 [#allocation10], 4
      %s56 = int_to_ptr.vmem [resolvable:$true] %s55
      %61 = dma.hbm_to_vmem [thread:$0]  %s4, 1024, %s56, [#allocation11], 512, 512, 32
    $region21: #{tpu_custom_call.1} parent=1 // pred_fallthru
      _
    // Predicated region
    $region22: #{tpu_custom_call.1} parent=1 // pred_check
      _
    $region23: #{tpu_custom_call.1} parent=1 // pred_check_branch
      %63 = sbr.rel (0) target = $region25
    $region24: #{tpu_custom_call.1} parent=1 // pred_region
      %64 = dma.done [#allocation5], 256
    $region25: #{tpu_custom_call.1} parent=1 // pred_fallthru
      _
    // Predicated region
    $region26: #{tpu_custom_call.1} parent=1 // pred_check
      _
    $region27: #{tpu_custom_call.1} parent=1 // pred_check_branch
      %66 = sbr.rel (0) target = $region29
    $region28: #{tpu_custom_call.1} parent=1 // pred_region
      %67 = dma.done [#allocation8], 64
    $region29: #{tpu_custom_call.1} parent=1 // pred_fallthru
      _
    // Predicated region
    $region30: #{tpu_custom_call.1} parent=1 // pred_check
      _
    $region31: #{tpu_custom_call.1} parent=1 // pred_check_branch
      %69 = sbr.rel (0) target = $region33
    $region32: #{tpu_custom_call.1} parent=1 // pred_region
      %70 = dma.done [#allocation8], 1024
    $region33: #{tpu_custom_call.1} parent=1 // pred_fallthru
      _
    // Predicated region
    $region34: #{tpu_custom_call.1} parent=1 // pred_check
      _
    $region35: #{tpu_custom_call.1} parent=1 // pred_check_branch
      %72 = sbr.rel (0) target = $region37
    $region36: #{tpu_custom_call.1} parent=1 // pred_region
      %73 = dma.done [#allocation11], 1024
    $region37: #{tpu_custom_call.1} parent=1 // pred_fallthru
      _
    %v74 = vld [vmem:[#allocation4] sm:$0xff]
    %75 = vst [vmem:[#allocation2 + $0x4] sm:$0xff] %v74
    %s76 = scalar_lea.vmem [#allocation4], 8
    %v77 = vld [vmem:[%s76] sm:$0xff]
    %78 = vst [vmem:[#allocation2 + $0xc] sm:$0xff] %v77
    %v79 = vld [vmem:[#allocation2] sm:$0xff]
    %v80 = vld [vmem:[#allocation2 + $0x8] sm:$0xff]
    %v81 = vld [vmem:[#allocation2 + $0x10] sm:$0xf]
    %v82 = vld [vmem:[#allocation9] ss:$8 sm:$0xf]
    %vm83 = vcmp.gt.f32.partialorder %v82, 0.5
    %v84 = vsel %vm83, 1, 0
    %v85 = vlaneseq
    %v86 = vshrl.u32 %v85, 7
    %v87 = vsub.s32 0, %v86
    %v88 = vrot.slane %v84, %v87
    %v89 = vlaneseq
    %v90 = vshrl.u32 %v89, 7
    %v91 = vsub.s32 1, %v90
    %v92 = vrot.slane %v84, %v91
    %v93 = vlaneseq
    %v94 = vshrl.u32 %v93, 7
    %v95 = vsub.s32 2, %v94
    %v96 = vrot.slane %v84, %v95
    %v97 = vlaneseq
    %v98 = vshrl.u32 %v97, 7
    %v99 = vsub.s32 3, %v98
    %v100 = vrot.slane %v84, %v99
    %vm101 = vcmp.eq.s32.totalorder %v88, 1
    %vm102 = vcmp.eq.s32.totalorder %v92, 1
    %vm103 = vcmp.eq.s32.totalorder %v96, 1
    %vm104 = vcmp.eq.s32.totalorder %v100, 1
    %v108 = vcombine.high %v79, %v79
    %v109 = vcombine.high %v80, %v80
    %110 = vrot.lane.b32.xlu0 %v79, 17
    %v111 = vpop.permute.xlu0 %110
    %112 = vrot.lane.b32.xlu0 %v108, 17
    %v113 = vpop.permute.xlu0 %112
    %114 = vrot.lane.b32.xlu0 %v80, 17
    %v115 = vpop.permute.xlu0 %114
    %116 = vrot.lane.b32.xlu0 %v109, 17
    %v117 = vpop.permute.xlu0 %116
    %118 = vrot.lane.b32.xlu0 %v81, 17
    %v119 = vpop.permute.xlu0 %118
    %vm120 = vcmask 138240
    %v121 = vsel %vm120, %v111, %v113
    %v122 = vsel %vm120, %v113, %v115
    %v123 = vsel %vm120, %v115, %v117
    %v124 = vsel %vm120, %v117, %v119
    %v129 = vsel %vm101, %v121, 0.0
    %v130 = vsel %vm102, %v122, 0.0
    %v131 = vsel %vm103, %v123, 0.0
    %v132 = vsel %vm104, %v124, 0.0
    %133 = vst [vmem:[#allocation3] sm:$0xf] %v129
    %134 = vst [vmem:[#allocation3 + $0x8] sm:$0xf] %v130
    %135 = vst [vmem:[#allocation3 + $0x10] sm:$0xf] %v131
    %136 = vst [vmem:[#allocation3 + $0x18] sm:$0xf] %v132
    %v137 = vld [vmem:[#allocation2] sm:$0xff]
    %v138 = vld [vmem:[#allocation2 + $0x8] sm:$0xff]
    %v139 = vld [vmem:[#allocation2 + $0x10] sm:$0xf]
    %s140 = scalar_lea.vmem [#allocation9], 1
    %v141 = vld [vmem:[%s140] ss:$8 sm:$0xf]
    %vm142 = vcmp.gt.f32.partialorder %v141, 0.5
    %v143 = vsel %vm142, 1, 0
    %v144 = vlaneseq
    %v145 = vshrl.u32 %v144, 7
    %v146 = vsub.s32 0, %v145
    %v147 = vrot.slane %v143, %v146
    %v148 = vlaneseq
    %v149 = vshrl.u32 %v148, 7
    %v150 = vsub.s32 1, %v149
    %v151 = vrot.slane %v143, %v150
    %v152 = vlaneseq
    %v153 = vshrl.u32 %v152, 7
    %v154 = vsub.s32 2, %v153
    %v155 = vrot.slane %v143, %v154
    %v156 = vlaneseq
    %v157 = vshrl.u32 %v156, 7
    %v158 = vsub.s32 3, %v157
    %v159 = vrot.slane %v143, %v158
    %vm160 = vcmp.eq.s32.totalorder %v147, 1
    %vm161 = vcmp.eq.s32.totalorder %v151, 1
    %vm162 = vcmp.eq.s32.totalorder %v155, 1
    %vm163 = vcmp.eq.s32.totalorder %v159, 1
    %v167 = vcombine.high %v137, %v137
    %v168 = vcombine.high %v138, %v138
    %169 = vrot.lane.b32.xlu0 %v137, 16
    %v170 = vpop.permute.xlu0 %169
    %171 = vrot.lane.b32.xlu0 %v167, 16
    %v172 = vpop.permute.xlu0 %171
    %173 = vrot.lane.b32.xlu0 %v138, 16
    %v174 = vpop.permute.xlu0 %173
    %175 = vrot.lane.b32.xlu0 %v168, 16
    %v176 = vpop.permute.xlu0 %175
    %177 = vrot.lane.b32.xlu0 %v139, 16
    %v178 = vpop.permute.xlu0 %177
    %vm179 = vcmask 130048
    %v180 = vsel %vm179, %v170, %v172
    %v181 = vsel %vm179, %v172, %v174
    %v182 = vsel %vm179, %v174, %v176
    %v183 = vsel %vm179, %v176, %v178
    %v188 = vsel %vm160, %v180, 0.0
    %v189 = vsel %vm161, %v181, 0.0
    %v190 = vsel %vm162, %v182, 0.0
    %v191 = vsel %vm163, %v183, 0.0
    %v196 = vrot.slane %v188, 4
    %v197 = vrot.slane %v189, 4
    %v198 = vrot.slane %v190, 4
    %v199 = vrot.slane %v191, 4
    %204 = vst [vmem:[#allocation3] sm:$0xf0] %v196
    %205 = vst [vmem:[#allocation3 + $0x8] sm:$0xf0] %v197
    %206 = vst [vmem:[#allocation3 + $0x10] sm:$0xf0] %v198
    %207 = vst [vmem:[#allocation3 + $0x18] sm:$0xf0] %v199
    %v208 = vld [vmem:[#allocation2] sm:$0xff]
    %v209 = vld [vmem:[#allocation2 + $0x8] sm:$0xff]
    %v210 = vld [vmem:[#allocation2 + $0x10] sm:$0xf]
    %s211 = scalar_lea.vmem [#allocation9], 2
    %v212 = vld [vmem:[%s211] ss:$8 sm:$0xf]
    %vm213 = vcmp.gt.f32.partialorder %v212, 0.5
    %v214 = vsel %vm213, 1, 0
    %v215 = vlaneseq
    %v216 = vshrl.u32 %v215, 7
    %v217 = vsub.s32 0, %v216
    %v218 = vrot.slane %v214, %v217
    %v219 = vlaneseq
    %v220 = vshrl.u32 %v219, 7
    %v221 = vsub.s32 1, %v220
    %v222 = vrot.slane %v214, %v221
    %v223 = vlaneseq
    %v224 = vshrl.u32 %v223, 7
    %v225 = vsub.s32 2, %v224
    %v226 = vrot.slane %v214, %v225
    %v227 = vlaneseq
    %v228 = vshrl.u32 %v227, 7
    %v229 = vsub.s32 3, %v228
    %v230 = vrot.slane %v214, %v229
    %vm231 = vcmp.eq.s32.totalorder %v218, 1
    %vm232 = vcmp.eq.s32.totalorder %v222, 1
    %vm233 = vcmp.eq.s32.totalorder %v226, 1
    %vm234 = vcmp.eq.s32.totalorder %v230, 1
    %v238 = vcombine.high %v208, %v208
    %v239 = vcombine.high %v209, %v209
    %240 = vrot.lane.b32.xlu0 %v208, 15
    %v241 = vpop.permute.xlu0 %240
    %242 = vrot.lane.b32.xlu0 %v238, 15
    %v243 = vpop.permute.xlu0 %242
    %244 = vrot.lane.b32.xlu0 %v209, 15
    %v245 = vpop.permute.xlu0 %244
    %246 = vrot.lane.b32.xlu0 %v239, 15
    %v247 = vpop.permute.xlu0 %246
    %248 = vrot.lane.b32.xlu0 %v210, 15
    %v249 = vpop.permute.xlu0 %248
    %vm250 = vcmask 121856
    %v251 = vsel %vm250, %v241, %v243
    %v252 = vsel %vm250, %v243, %v245
    %v253 = vsel %vm250, %v245, %v247
    %v254 = vsel %vm250, %v247, %v249
    %v259 = vsel %vm231, %v251, 0.0
    %v260 = vsel %vm232, %v252, 0.0
    %v261 = vsel %vm233, %v253, 0.0
    %v262 = vsel %vm234, %v254, 0.0
    %263 = vst [vmem:[#allocation3 + $0x20] sm:$0xf] %v259
    %264 = vst [vmem:[#allocation3 + $0x28] sm:$0xf] %v260
    %265 = vst [vmem:[#allocation3 + $0x30] sm:$0xf] %v261
    %266 = vst [vmem:[#allocation3 + $0x38] sm:$0xf] %v262
    %v267 = vld [vmem:[#allocation2] sm:$0xff]
    %v268 = vld [vmem:[#allocation2 + $0x8] sm:$0xff]
    %v269 = vld [vmem:[#allocation2 + $0x10] sm:$0xf]
    %s270 = scalar_lea.vmem [#allocation9], 3
    %v271 = vld [vmem:[%s270] ss:$8 sm:$0xf]
    %vm272 = vcmp.gt.f32.partialorder %v271, 0.5
    %v273 = vsel %vm272, 1, 0
    %v274 = vlaneseq
    %v275 = vshrl.u32 %v274, 7
    %v276 = vsub.s32 0, %v275
    %v277 = vrot.slane %v273, %v276
    %v278 = vlaneseq
    %v279 = vshrl.u32 %v278, 7
    %v280 = vsub.s32 1, %v279
    %v281 = vrot.slane %v273, %v280
    %v282 = vlaneseq
    %v283 = vshrl.u32 %v282, 7
    %v284 = vsub.s32 2, %v283
    %v285 = vrot.slane %v273, %v284
    %v286 = vlaneseq
    %v287 = vshrl.u32 %v286, 7
    %v288 = vsub.s32 3, %v287
    %v289 = vrot.slane %v273, %v288
    %vm290 = vcmp.eq.s32.totalorder %v277, 1
    %vm291 = vcmp.eq.s32.totalorder %v281, 1
    %vm292 = vcmp.eq.s32.totalorder %v285, 1
    %vm293 = vcmp.eq.s32.totalorder %v289, 1
    %v297 = vcombine.high %v267, %v267
    %v298 = vcombine.high %v268, %v268
    %299 = vrot.lane.b32.xlu0 %v267, 1
    %v300 = vpop.permute.xlu0 %299
    %301 = vrot.lane.b32.xlu0 %v297, 1
    %v302 = vpop.permute.xlu0 %301
    %303 = vrot.lane.b32.xlu0 %v268, 1
    %v304 = vpop.permute.xlu0 %303
    %305 = vrot.lane.b32.xlu0 %v298, 1
    %v306 = vpop.permute.xlu0 %305
    %307 = vrot.lane.b32.xlu0 %v269, 1
    %v308 = vpop.permute.xlu0 %307
    %vm309 = vcmask 7168
    %v310 = vsel %vm309, %v300, %v302
    %v311 = vsel %vm309, %v302, %v304
    %v312 = vsel %vm309, %v304, %v306
    %v313 = vsel %vm309, %v306, %v308
    %v318 = vsel %vm290, %v310, 0.0
    %v319 = vsel %vm291, %v311, 0.0
    %v320 = vsel %vm292, %v312, 0.0
    %v321 = vsel %vm293, %v313, 0.0
    %v326 = vrot.slane %v318, 4
    %v327 = vrot.slane %v319, 4
    %v328 = vrot.slane %v320, 4
    %v329 = vrot.slane %v321, 4
    %334 = vst [vmem:[#allocation3 + $0x20] sm:$0xf0] %v326
    %335 = vst [vmem:[#allocation3 + $0x28] sm:$0xf0] %v327
    %336 = vst [vmem:[#allocation3 + $0x30] sm:$0xf0] %v328
    %337 = vst [vmem:[#allocation3 + $0x38] sm:$0xf0] %v329
    %v338 = vld [vmem:[#allocation2 + $0x4] sm:$0xff]
    %v339 = vld [vmem:[#allocation2 + $0xc] sm:$0xff]
    %s340 = scalar_lea.vmem [#allocation9], 4
    %v341 = vld [vmem:[%s340] ss:$8 sm:$0xf]
    %vm342 = vcmp.gt.f32.partialorder %v341, 0.5
    %v343 = vsel %vm342, 1, 0
    %v344 = vlaneseq
    %v345 = vshrl.u32 %v344, 7
    %v346 = vsub.s32 0, %v345
    %v347 = vrot.slane %v343, %v346
    %v348 = vlaneseq
    %v349 = vshrl.u32 %v348, 7
    %v350 = vsub.s32 1, %v349
    %v351 = vrot.slane %v343, %v350
    %v352 = vlaneseq
    %v353 = vshrl.u32 %v352, 7
    %v354 = vsub.s32 2, %v353
    %v355 = vrot.slane %v343, %v354
    %v356 = vlaneseq
    %v357 = vshrl.u32 %v356, 7
    %v358 = vsub.s32 3, %v357
    %v359 = vrot.slane %v343, %v358
    %vm360 = vcmp.eq.s32.totalorder %v347, 1
    %vm361 = vcmp.eq.s32.totalorder %v351, 1
    %vm362 = vcmp.eq.s32.totalorder %v355, 1
    %vm363 = vcmp.eq.s32.totalorder %v359, 1
    %v366 = vcombine.high %v338, %v338
    %v367 = vcombine.high %v339, %v339
    %v370 = vsel %vm360, %v338, 0.0
    %v371 = vsel %vm361, %v366, 0.0
    %v372 = vsel %vm362, %v339, 0.0
    %v373 = vsel %vm363, %v367, 0.0
    %374 = vst [vmem:[#allocation3 + $0x40] sm:$0xf] %v370
    %375 = vst [vmem:[#allocation3 + $0x48] sm:$0xf] %v371
    %376 = vst [vmem:[#allocation3 + $0x50] sm:$0xf] %v372
    %377 = vst [vmem:[#allocation3 + $0x58] sm:$0xf] %v373
    %v378 = vld [vmem:[#allocation2 + $0x4] sm:$0xff]
    %v379 = vld [vmem:[#allocation2 + $0xc] sm:$0xff]
    %v380 = vld [vmem:[#allocation2 + $0x14] sm:$0xf]
    %s381 = scalar_lea.vmem [#allocation9], 5
    %v382 = vld [vmem:[%s381] ss:$8 sm:$0xf]
    %vm383 = vcmp.gt.f32.partialorder %v382, 0.5
    %v384 = vsel %vm383, 1, 0
    %v385 = vlaneseq
    %v386 = vshrl.u32 %v385, 7
    %v387 = vsub.s32 0, %v386
    %v388 = vrot.slane %v384, %v387
    %v389 = vlaneseq
    %v390 = vshrl.u32 %v389, 7
    %v391 = vsub.s32 1, %v390
    %v392 = vrot.slane %v384, %v391
    %v393 = vlaneseq
    %v394 = vshrl.u32 %v393, 7
    %v395 = vsub.s32 2, %v394
    %v396 = vrot.slane %v384, %v395
    %v397 = vlaneseq
    %v398 = vshrl.u32 %v397, 7
    %v399 = vsub.s32 3, %v398
    %v400 = vrot.slane %v384, %v399
    %vm401 = vcmp.eq.s32.totalorder %v388, 1
    %vm402 = vcmp.eq.s32.totalorder %v392, 1
    %vm403 = vcmp.eq.s32.totalorder %v396, 1
    %vm404 = vcmp.eq.s32.totalorder %v400, 1
    %v408 = vcombine.high %v378, %v378
    %v409 = vcombine.high %v379, %v379
    %410 = vrot.lane.b32.xlu0 %v378, 127
    %v411 = vpop.permute.xlu0 %410
    %412 = vrot.lane.b32.xlu0 %v408, 127
    %v413 = vpop.permute.xlu0 %412
    %414 = vrot.lane.b32.xlu0 %v379, 127
    %v415 = vpop.permute.xlu0 %414
    %416 = vrot.lane.b32.xlu0 %v409, 127
    %v417 = vpop.permute.xlu0 %416
    %418 = vrot.lane.b32.xlu0 %v380, 127
    %v419 = vpop.permute.xlu0 %418
    %vm420 = vcmask 1039360
    %v421 = vsel %vm420, %v411, %v413
    %v422 = vsel %vm420, %v413, %v415
    %v423 = vsel %vm420, %v415, %v417
    %v424 = vsel %vm420, %v417, %v419
    %v429 = vsel %vm401, %v421, 0.0
    %v430 = vsel %vm402, %v422, 0.0
    %v431 = vsel %vm403, %v423, 0.0
    %v432 = vsel %vm404, %v424, 0.0
    %v437 = vrot.slane %v429, 4
    %v438 = vrot.slane %v430, 4
    %v439 = vrot.slane %v431, 4
    %v440 = vrot.slane %v432, 4
    %445 = vst [vmem:[#allocation3 + $0x40] sm:$0xf0] %v437
    %446 = vst [vmem:[#allocation3 + $0x48] sm:$0xf0] %v438
    %447 = vst [vmem:[#allocation3 + $0x50] sm:$0xf0] %v439
    %448 = vst [vmem:[#allocation3 + $0x58] sm:$0xf0] %v440
    %v449 = vld [vmem:[#allocation2 + $0x4] sm:$0xff]
    %v450 = vld [vmem:[#allocation2 + $0xc] sm:$0xff]
    %v451 = vld [vmem:[#allocation2 + $0x14] sm:$0xf]
    %s452 = scalar_lea.vmem [#allocation9], 6
    %v453 = vld [vmem:[%s452] ss:$8 sm:$0xf]
    %vm454 = vcmp.gt.f32.partialorder %v453, 0.5
    %v455 = vsel %vm454, 1, 0
    %v456 = vlaneseq
    %v457 = vshrl.u32 %v456, 7
    %v458 = vsub.s32 0, %v457
    %v459 = vrot.slane %v455, %v458
    %v460 = vlaneseq
    %v461 = vshrl.u32 %v460, 7
    %v462 = vsub.s32 1, %v461
    %v463 = vrot.slane %v455, %v462
    %v464 = vlaneseq
    %v465 = vshrl.u32 %v464, 7
    %v466 = vsub.s32 2, %v465
    %v467 = vrot.slane %v455, %v466
    %v468 = vlaneseq
    %v469 = vshrl.u32 %v468, 7
    %v470 = vsub.s32 3, %v469
    %v471 = vrot.slane %v455, %v470
    %vm472 = vcmp.eq.s32.totalorder %v459, 1
    %vm473 = vcmp.eq.s32.totalorder %v463, 1
    %vm474 = vcmp.eq.s32.totalorder %v467, 1
    %vm475 = vcmp.eq.s32.totalorder %v471, 1
    %v479 = vcombine.high %v449, %v449
    %v480 = vcombine.high %v450, %v450
    %481 = vrot.lane.b32.xlu0 %v449, 113
    %v482 = vpop.permute.xlu0 %481
    %483 = vrot.lane.b32.xlu0 %v479, 113
    %v484 = vpop.permute.xlu0 %483
    %485 = vrot.lane.b32.xlu0 %v450, 113
    %v486 = vpop.permute.xlu0 %485
    %487 = vrot.lane.b32.xlu0 %v480, 113
    %v488 = vpop.permute.xlu0 %487
    %489 = vrot.lane.b32.xlu0 %v451, 113
    %v490 = vpop.permute.xlu0 %489
    %vm491 = vcmask 924672
    %v492 = vsel %vm491, %v482, %v484
    %v493 = vsel %vm491, %v484, %v486
    %v494 = vsel %vm491, %v486, %v488
    %v495 = vsel %vm491, %v488, %v490
    %v500 = vsel %vm472, %v492, 0.0
    %v501 = vsel %vm473, %v493, 0.0
    %v502 = vsel %vm474, %v494, 0.0
    %v503 = vsel %vm475, %v495, 0.0
    %504 = vst [vmem:[#allocation3 + $0x60] sm:$0xf] %v500
    %505 = vst [vmem:[#allocation3 + $0x68] sm:$0xf] %v501
    %506 = vst [vmem:[#allocation3 + $0x70] sm:$0xf] %v502
    %507 = vst [vmem:[#allocation3 + $0x78] sm:$0xf] %v503
    %v508 = vld [vmem:[#allocation2 + $0x4] sm:$0xff]
    %v509 = vld [vmem:[#allocation2 + $0xc] sm:$0xff]
    %v510 = vld [vmem:[#allocation2 + $0x14] sm:$0xf]
    %s511 = scalar_lea.vmem [#allocation9], 7
    %v512 = vld [vmem:[%s511] ss:$8 sm:$0xf]
    %vm513 = vcmp.gt.f32.partialorder %v512, 0.5
    %v514 = vsel %vm513, 1, 0
    %v515 = vlaneseq
    %v516 = vshrl.u32 %v515, 7
    %v517 = vsub.s32 0, %v516
    %v518 = vrot.slane %v514, %v517
    %v519 = vlaneseq
    %v520 = vshrl.u32 %v519, 7
    %v521 = vsub.s32 1, %v520
    %v522 = vrot.slane %v514, %v521
    %v523 = vlaneseq
    %v524 = vshrl.u32 %v523, 7
    %v525 = vsub.s32 2, %v524
    %v526 = vrot.slane %v514, %v525
    %v527 = vlaneseq
    %v528 = vshrl.u32 %v527, 7
    %v529 = vsub.s32 3, %v528
    %v530 = vrot.slane %v514, %v529
    %vm531 = vcmp.eq.s32.totalorder %v518, 1
    %vm532 = vcmp.eq.s32.totalorder %v522, 1
    %vm533 = vcmp.eq.s32.totalorder %v526, 1
    %vm534 = vcmp.eq.s32.totalorder %v530, 1
    %v538 = vcombine.high %v508, %v508
    %v539 = vcombine.high %v509, %v509
    %540 = vrot.lane.b32.xlu0 %v508, 112
    %v541 = vpop.permute.xlu0 %540
    %542 = vrot.lane.b32.xlu0 %v538, 112
    %v543 = vpop.permute.xlu0 %542
    %544 = vrot.lane.b32.xlu0 %v509, 112
    %v545 = vpop.permute.xlu0 %544
    %546 = vrot.lane.b32.xlu0 %v539, 112
    %v547 = vpop.permute.xlu0 %546
    %548 = vrot.lane.b32.xlu0 %v510, 112
    %v549 = vpop.permute.xlu0 %548
    %vm550 = vcmask 916480
    %v551 = vsel %vm550, %v541, %v543
    %v552 = vsel %vm550, %v543, %v545
    %v553 = vsel %vm550, %v545, %v547
    %v554 = vsel %vm550, %v547, %v549
    %v559 = vsel %vm531, %v551, 0.0
    %v560 = vsel %vm532, %v552, 0.0
    %v561 = vsel %vm533, %v553, 0.0
    %v562 = vsel %vm534, %v554, 0.0
    %v567 = vrot.slane %v559, 4
    %v568 = vrot.slane %v560, 4
    %v569 = vrot.slane %v561, 4
    %v570 = vrot.slane %v562, 4
    %575 = vst [vmem:[#allocation3 + $0x60] sm:$0xf0] %v567
    %576 = vst [vmem:[#allocation3 + $0x68] sm:$0xf0] %v568
    %577 = vst [vmem:[#allocation3 + $0x70] sm:$0xf0] %v569
    %578 = vst [vmem:[#allocation3 + $0x78] sm:$0xf0] %v570
    %v579 = vld [vmem:[#allocation2 + $0x4] sm:$0xff]
    %v580 = vld [vmem:[#allocation2 + $0xc] sm:$0xff]
    %v581 = vld [vmem:[#allocation2 + $0x14] sm:$0xf]
    %s582 = scalar_lea.vmem [#allocation9], 32
    %v583 = vld [vmem:[%s582] ss:$8 sm:$0xf]
    %vm584 = vcmp.gt.f32.partialorder %v583, 0.5
    %v585 = vsel %vm584, 1, 0
    %v586 = vlaneseq
    %v587 = vshrl.u32 %v586, 7
    %v588 = vsub.s32 0, %v587
    %v589 = vrot.slane %v585, %v588
    %v590 = vlaneseq
    %v591 = vshrl.u32 %v590, 7
    %v592 = vsub.s32 1, %v591
    %v593 = vrot.slane %v585, %v592
    %v594 = vlaneseq
    %v595 = vshrl.u32 %v594, 7
    %v596 = vsub.s32 2, %v595
    %v597 = vrot.slane %v585, %v596
    %v598 = vlaneseq
    %v599 = vshrl.u32 %v598, 7
    %v600 = vsub.s32 3, %v599
    %v601 = vrot.slane %v585, %v600
    %vm602 = vcmp.eq.s32.totalorder %v589, 1
    %vm603 = vcmp.eq.s32.totalorder %v593, 1
    %vm604 = vcmp.eq.s32.totalorder %v597, 1
    %vm605 = vcmp.eq.s32.totalorder %v601, 1
    %v609 = vcombine.high %v579, %v579
    %v610 = vcombine.high %v580, %v580
    %611 = vrot.lane.b32.xlu0 %v579, 111
    %v612 = vpop.permute.xlu0 %611
    %613 = vrot.lane.b32.xlu0 %v609, 111
    %v614 = vpop.permute.xlu0 %613
    %615 = vrot.lane.b32.xlu0 %v580, 111
    %v616 = vpop.permute.xlu0 %615
    %617 = vrot.lane.b32.xlu0 %v610, 111
    %v618 = vpop.permute.xlu0 %617
    %619 = vrot.lane.b32.xlu0 %v581, 111
    %v620 = vpop.permute.xlu0 %619
    %vm621 = vcmask 908288
    %v622 = vsel %vm621, %v612, %v614
    %v623 = vsel %vm621, %v614, %v616
    %v624 = vsel %vm621, %v616, %v618
    %v625 = vsel %vm621, %v618, %v620
    %v630 = vsel %vm602, %v622, 0.0
    %v631 = vsel %vm603, %v623, 0.0
    %v632 = vsel %vm604, %v624, 0.0
    %v633 = vsel %vm605, %v625, 0.0
    %634 = vst [vmem:[#allocation3 + $0x80] sm:$0xf] %v630
    %635 = vst [vmem:[#allocation3 + $0x88] sm:$0xf] %v631
    %636 = vst [vmem:[#allocation3 + $0x90] sm:$0xf] %v632
    %637 = vst [vmem:[#allocation3 + $0x98] sm:$0xf] %v633
    %v638 = vlaneseq
    %vm639 = vcmp.ge.s32.totalorder %v638, 0
    %vm640 = vcmp.lt.s32.totalorder %v638, 512
    %vm641 = vmand %vm639, %vm640
    %s642 = scalar_lea.vmem [#allocation3], 132
    %643 = vst.msk [vmem:[%s642] ss:$8 sm:$0xf] %vm641, 1.0
    %644 = vst.msk [vmem:[%s642] ss:$8 sm:$0x0] %vm641, 1.0
    %v645 = vld [vmem:[#allocation7] sm:$0xf]
    %v646 = vld [vmem:[#allocation3] sm:$0xff]
    %v647 = vld [vmem:[#allocation3 + $0x8] sm:$0xff]
    %v648 = vld [vmem:[#allocation3 + $0x10] sm:$0xff]
    %v649 = vld [vmem:[#allocation3 + $0x18] sm:$0xff]
    %v650 = vld [vmem:[#allocation3 + $0x20] sm:$0xff]
    %v651 = vld [vmem:[#allocation3 + $0x28] sm:$0xff]
    %v652 = vld [vmem:[#allocation3 + $0x30] sm:$0xff]
    %v653 = vld [vmem:[#allocation3 + $0x38] sm:$0xff]
    %v654 = vld [vmem:[#allocation3 + $0x40] sm:$0xff]
    %v655 = vld [vmem:[#allocation3 + $0x48] sm:$0xff]
    %v656 = vld [vmem:[#allocation3 + $0x50] sm:$0xff]
    %v657 = vld [vmem:[#allocation3 + $0x58] sm:$0xff]
    %v658 = vld [vmem:[#allocation3 + $0x60] sm:$0xff]
    %v659 = vld [vmem:[#allocation3 + $0x68] sm:$0xff]
    %v660 = vld [vmem:[#allocation3 + $0x70] sm:$0xff]
    %v661 = vld [vmem:[#allocation3 + $0x78] sm:$0xff]
    %v662 = vld [vmem:[#allocation3 + $0x80] sm:$0x1f]
    %v663 = vld [vmem:[#allocation3 + $0x88] sm:$0x1f]
    %v664 = vld [vmem:[#allocation3 + $0x90] sm:$0x1f]
    %v665 = vld [vmem:[#allocation3 + $0x98] sm:$0x1f]
    %vm666 = vcmask 302080
    %v668 = vsel %vm666, %v645, 0
    %vm670 = vcmask 1044480
    %v672 = vsel %vm670, %v662, 0
    %v675 = vsel %vm670, %v663, 0
    %v678 = vsel %vm670, %v664, 0
    %v681 = vsel %vm670, %v665, 0
    %683 = vmatprep.subr.mxu0 0.0
    %684 = vmatpush1.msra.mxu0 0.0
    %685 = vmatprep.subr.mxu0 0.0
    %686 = vmatpush1.msra.mxu0 0.0
    %687 = vmatprep.subr.mxu0 0.0
    %688 = vmatpush1.msra.mxu0 0.0
    %689 = vmatprep.subr.mxu0 0.0
    %690 = vmatpush1.msra.mxu0 0.0
    %691 = vmatprep.subr.mxu0 0.0
    %692 = vmatpush1.msra.mxu0 0.0
    %693 = vmatprep.subr.mxu0 0.0
    %694 = vmatpush1.msra.mxu0 0.0
    %695 = vmatprep.subr.mxu0 0.0
    %696 = vmatpush1.msra.mxu0 0.0
    %697 = vmatprep.subr.mxu0 0.0
    %698 = vmatpush1.msra.mxu0 0.0
    %699 = vmatprep.subr.mxu0 0.0
    %700 = vmatpush1.msra.mxu0 0.0
    %701 = vmatprep.subr.mxu0 0.0
    %702 = vmatpush1.msra.mxu0 0.0
    %703 = vmatprep.subr.mxu0 0.0
    %704 = vmatpush1.msra.mxu0 0.0
    %705 = vmatprep.subr.mxu0 %v675
    %706 = vmatpush1.msra.mxu0 %v672
    %707 = vmatprep.subr.mxu0 %v659
    %708 = vmatpush1.msra.mxu0 %v658
    %709 = vmatprep.subr.mxu0 %v655
    %710 = vmatpush1.msra.mxu0 %v654
    %711 = vmatprep.subr.mxu0 %v651
    %712 = vmatpush1.msra.mxu0 %v650
    %713 = vmatprep.subr.mxu0 %v647
    %714 = vmatpush1.msra.mxu0 %v646
    %715 = vmatprep.subr.mxu0 0.0
    %716 = vmatpush2.msra.mxu0 0.0
    %717 = vmatprep.subr.mxu0 0.0
    %718 = vmatpush2.msra.mxu0 0.0
    %719 = vmatprep.subr.mxu0 0.0
    %720 = vmatpush2.msra.mxu0 0.0
    %721 = vmatprep.subr.mxu0 0.0
    %722 = vmatpush2.msra.mxu0 0.0
    %723 = vmatprep.subr.mxu0 0.0
    %724 = vmatpush2.msra.mxu0 0.0
    %725 = vmatprep.subr.mxu0 0.0
    %726 = vmatpush2.msra.mxu0 0.0
    %727 = vmatprep.subr.mxu0 0.0
    %728 = vmatpush2.msra.mxu0 0.0
    %729 = vmatprep.subr.mxu0 0.0
    %730 = vmatpush2.msra.mxu0 0.0
    %731 = vmatprep.subr.mxu0 0.0
    %732 = vmatpush2.msra.mxu0 0.0
    %733 = vmatprep.subr.mxu0 0.0
    %734 = vmatpush2.msra.mxu0 0.0
    %735 = vmatprep.subr.mxu0 0.0
    %736 = vmatpush2.msra.mxu0 0.0
    %737 = vmatprep.subr.mxu0 0.0
    %738 = vmatpush2.msra.mxu0 0.0
    %739 = vmatprep.subr.mxu0 0.0
    %740 = vmatpush2.msra.mxu0 0.0
    %741 = vmatprep.subr.mxu0 0.0
    %742 = vmatpush2.msra.mxu0 0.0
    %743 = vmatprep.subr.mxu0 0.0
    %744 = vmatpush2.msra.mxu0 0.0
    %745 = vmatprep.subr.mxu0 0.0
    %746 = vmatpush2.msra.mxu0 0.0
    %747 = vmatprep.mubr.f32.mxu0 0.0
    %748 = vmatmul.mubr.f32.gmra.mxu0 %v668
    %v749 = vpop.f32.mrf.mxu0
    %v750 = vadd.f32 0.0, %v749
    %v751 = vpop.f32.mrf.mxu0
    %v752 = vadd.f32 0.0, %v751
    %753 = vdwg.mxu0
    %754 = vmatprep.subr.mxu0 0.0
    %755 = vmatpush1.msra.mxu0 0.0
    %756 = vmatprep.subr.mxu0 0.0
    %757 = vmatpush1.msra.mxu0 0.0
    %758 = vmatprep.subr.mxu0 0.0
    %759 = vmatpush1.msra.mxu0 0.0
    %760 = vmatprep.subr.mxu0 0.0
    %761 = vmatpush1.msra.mxu0 0.0
    %762 = vmatprep.subr.mxu0 0.0
    %763 = vmatpush1.msra.mxu0 0.0
    %764 = vmatprep.subr.mxu0 0.0
    %765 = vmatpush1.msra.mxu0 0.0
    %766 = vmatprep.subr.mxu0 0.0
    %767 = vmatpush1.msra.mxu0 0.0
    %768 = vmatprep.subr.mxu0 0.0
    %769 = vmatpush1.msra.mxu0 0.0
    %770 = vmatprep.subr.mxu0 0.0
    %771 = vmatpush1.msra.mxu0 0.0
    %772 = vmatprep.subr.mxu0 0.0
    %773 = vmatpush1.msra.mxu0 0.0
    %774 = vmatprep.subr.mxu0 0.0
    %775 = vmatpush1.msra.mxu0 0.0
    %776 = vmatprep.subr.mxu0 %v681
    %777 = vmatpush1.msra.mxu0 %v678
    %778 = vmatprep.subr.mxu0 %v661
    %779 = vmatpush1.msra.mxu0 %v660
    %780 = vmatprep.subr.mxu0 %v657
    %781 = vmatpush1.msra.mxu0 %v656
    %782 = vmatprep.subr.mxu0 %v653
    %783 = vmatpush1.msra.mxu0 %v652
    %784 = vmatprep.subr.mxu0 %v649
    %785 = vmatpush1.msra.mxu0 %v648
    %786 = vmatprep.subr.mxu0 0.0
    %787 = vmatpush2.msra.mxu0 0.0
    %788 = vmatprep.subr.mxu0 0.0
    %789 = vmatpush2.msra.mxu0 0.0
    %790 = vmatprep.subr.mxu0 0.0
    %791 = vmatpush2.msra.mxu0 0.0
    %792 = vmatprep.subr.mxu0 0.0
    %793 = vmatpush2.msra.mxu0 0.0
    %794 = vmatprep.subr.mxu0 0.0
    %795 = vmatpush2.msra.mxu0 0.0
    %796 = vmatprep.subr.mxu0 0.0
    %797 = vmatpush2.msra.mxu0 0.0
    %798 = vmatprep.subr.mxu0 0.0
    %799 = vmatpush2.msra.mxu0 0.0
    %800 = vmatprep.subr.mxu0 0.0
    %801 = vmatpush2.msra.mxu0 0.0
    %802 = vmatprep.subr.mxu0 0.0
    %803 = vmatpush2.msra.mxu0 0.0
    %804 = vmatprep.subr.mxu0 0.0
    %805 = vmatpush2.msra.mxu0 0.0
    %806 = vmatprep.subr.mxu0 0.0
    %807 = vmatpush2.msra.mxu0 0.0
    %808 = vmatprep.subr.mxu0 0.0
    %809 = vmatpush2.msra.mxu0 0.0
    %810 = vmatprep.subr.mxu0 0.0
    %811 = vmatpush2.msra.mxu0 0.0
    %812 = vmatprep.subr.mxu0 0.0
    %813 = vmatpush2.msra.mxu0 0.0
    %814 = vmatprep.subr.mxu0 0.0
    %815 = vmatpush2.msra.mxu0 0.0
    %816 = vmatprep.subr.mxu0 0.0
    %817 = vmatpush2.msra.mxu0 0.0
    %818 = vmatprep.mubr.f32.mxu0 0.0
    %819 = vmatmul.mubr.f32.gmra.mxu0 %v668
    %v820 = vpop.f32.mrf.mxu0
    %v821 = vadd.f32 0.0, %v820
    %v822 = vpop.f32.mrf.mxu0
    %v823 = vadd.f32 0.0, %v822
    %824 = vdwg.mxu0
    %v825 = vmax.f32 %v750, 0.0
    %v826 = vmax.f32 %v752, 0.0
    %v827 = vmax.f32 %v821, 0.0
    %v828 = vmax.f32 %v823, 0.0
    %v833 = vcombine.low %v825, %v826
    %v834 = vcombine.low %v827, %v828
    %837 = vst [vmem:[#allocation2 + $0x4] sm:$0xff] %v833
    %838 = vst [vmem:[#allocation2 + $0xc] sm:$0xff] %v834
    %v839 = vld [vmem:[#allocation2] sm:$0xff]
    %v840 = vld [vmem:[#allocation2 + $0x8] sm:$0xff]
    %v841 = vld [vmem:[#allocation2 + $0x10] sm:$0xf]
    %v842 = vld [vmem:[#allocation10] ss:$8 sm:$0xf]
    %vm843 = vcmp.gt.f32.partialorder %v842, 0.5
    %v844 = vsel %vm843, 1, 0
    %v845 = vlaneseq
    %v846 = vshrl.u32 %v845, 7
    %v847 = vsub.s32 0, %v846
    %v848 = vrot.slane %v844, %v847
    %v849 = vlaneseq
    %v850 = vshrl.u32 %v849, 7
    %v851 = vsub.s32 1, %v850
    %v852 = vrot.slane %v844, %v851
    %v853 = vlaneseq
    %v854 = vshrl.u32 %v853, 7
    %v855 = vsub.s32 2, %v854
    %v856 = vrot.slane %v844, %v855
    %v857 = vlaneseq
    %v858 = vshrl.u32 %v857, 7
    %v859 = vsub.s32 3, %v858
    %v860 = vrot.slane %v844, %v859
    %vm861 = vcmp.eq.s32.totalorder %v848, 1
    %vm862 = vcmp.eq.s32.totalorder %v852, 1
    %vm863 = vcmp.eq.s32.totalorder %v856, 1
    %vm864 = vcmp.eq.s32.totalorder %v860, 1
    %v868 = vcombine.high %v839, %v839
    %v869 = vcombine.high %v840, %v840
    %870 = vrot.lane.b32.xlu0 %v839, 17
    %v871 = vpop.permute.xlu0 %870
    %872 = vrot.lane.b32.xlu0 %v868, 17
    %v873 = vpop.permute.xlu0 %872
    %874 = vrot.lane.b32.xlu0 %v840, 17
    %v875 = vpop.permute.xlu0 %874
    %876 = vrot.lane.b32.xlu0 %v869, 17
    %v877 = vpop.permute.xlu0 %876
    %878 = vrot.lane.b32.xlu0 %v841, 17
    %v879 = vpop.permute.xlu0 %878
    %v880 = vsel %vm120, %v871, %v873
    %v881 = vsel %vm120, %v873, %v875
    %v882 = vsel %vm120, %v875, %v877
    %v883 = vsel %vm120, %v877, %v879
    %v888 = vsel %vm861, %v880, 0.0
    %v889 = vsel %vm862, %v881, 0.0
    %v890 = vsel %vm863, %v882, 0.0
    %v891 = vsel %vm864, %v883, 0.0
    %892 = vst [vmem:[#allocation3] sm:$0xf] %v888
    %893 = vst [vmem:[#allocation3 + $0x8] sm:$0xf] %v889
    %894 = vst [vmem:[#allocation3 + $0x10] sm:$0xf] %v890
    %895 = vst [vmem:[#allocation3 + $0x18] sm:$0xf] %v891
    %v896 = vld [vmem:[#allocation2] sm:$0xff]
    %v897 = vld [vmem:[#allocation2 + $0x8] sm:$0xff]
    %v898 = vld [vmem:[#allocation2 + $0x10] sm:$0xf]
    %s899 = scalar_lea.vmem [#allocation10], 1
    %v900 = vld [vmem:[%s899] ss:$8 sm:$0xf]
    %vm901 = vcmp.gt.f32.partialorder %v900, 0.5
    %v902 = vsel %vm901, 1, 0
    %v903 = vlaneseq
    %v904 = vshrl.u32 %v903, 7
    %v905 = vsub.s32 0, %v904
    %v906 = vrot.slane %v902, %v905
    %v907 = vlaneseq
    %v908 = vshrl.u32 %v907, 7
    %v909 = vsub.s32 1, %v908
    %v910 = vrot.slane %v902, %v909
    %v911 = vlaneseq
    %v912 = vshrl.u32 %v911, 7
    %v913 = vsub.s32 2, %v912
    %v914 = vrot.slane %v902, %v913
    %v915 = vlaneseq
    %v916 = vshrl.u32 %v915, 7
    %v917 = vsub.s32 3, %v916
    %v918 = vrot.slane %v902, %v917
    %vm919 = vcmp.eq.s32.totalorder %v906, 1
    %vm920 = vcmp.eq.s32.totalorder %v910, 1
    %vm921 = vcmp.eq.s32.totalorder %v914, 1
    %vm922 = vcmp.eq.s32.totalorder %v918, 1
    %v926 = vcombine.high %v896, %v896
    %v927 = vcombine.high %v897, %v897
    %928 = vrot.lane.b32.xlu0 %v896, 16
    %v929 = vpop.permute.xlu0 %928
    %930 = vrot.lane.b32.xlu0 %v926, 16
    %v931 = vpop.permute.xlu0 %930
    %932 = vrot.lane.b32.xlu0 %v897, 16
    %v933 = vpop.permute.xlu0 %932
    %934 = vrot.lane.b32.xlu0 %v927, 16
    %v935 = vpop.permute.xlu0 %934
    %936 = vrot.lane.b32.xlu0 %v898, 16
    %v937 = vpop.permute.xlu0 %936
    %v938 = vsel %vm179, %v929, %v931
    %v939 = vsel %vm179, %v931, %v933
    %v940 = vsel %vm179, %v933, %v935
    %v941 = vsel %vm179, %v935, %v937
    %v946 = vsel %vm919, %v938, 0.0
    %v947 = vsel %vm920, %v939, 0.0
    %v948 = vsel %vm921, %v940, 0.0
    %v949 = vsel %vm922, %v941, 0.0
    %v954 = vrot.slane %v946, 4
    %v955 = vrot.slane %v947, 4
    %v956 = vrot.slane %v948, 4
    %v957 = vrot.slane %v949, 4
    %962 = vst [vmem:[#allocation3] sm:$0xf0] %v954
    %963 = vst [vmem:[#allocation3 + $0x8] sm:$0xf0] %v955
    %964 = vst [vmem:[#allocation3 + $0x10] sm:$0xf0] %v956
    %965 = vst [vmem:[#allocation3 + $0x18] sm:$0xf0] %v957
    %v966 = vld [vmem:[#allocation2] sm:$0xff]
    %v967 = vld [vmem:[#allocation2 + $0x8] sm:$0xff]
    %v968 = vld [vmem:[#allocation2 + $0x10] sm:$0xf]
    %s969 = scalar_lea.vmem [#allocation10], 2
    %v970 = vld [vmem:[%s969] ss:$8 sm:$0xf]
    %vm971 = vcmp.gt.f32.partialorder %v970, 0.5
    %v972 = vsel %vm971, 1, 0
    %v973 = vlaneseq
    %v974 = vshrl.u32 %v973, 7
    %v975 = vsub.s32 0, %v974
    %v976 = vrot.slane %v972, %v975
    %v977 = vlaneseq
    %v978 = vshrl.u32 %v977, 7
    %v979 = vsub.s32 1, %v978
    %v980 = vrot.slane %v972, %v979
    %v981 = vlaneseq
    %v982 = vshrl.u32 %v981, 7
    %v983 = vsub.s32 2, %v982
    %v984 = vrot.slane %v972, %v983
    %v985 = vlaneseq
    %v986 = vshrl.u32 %v985, 7
    %v987 = vsub.s32 3, %v986
    %v988 = vrot.slane %v972, %v987
    %vm989 = vcmp.eq.s32.totalorder %v976, 1
    %vm990 = vcmp.eq.s32.totalorder %v980, 1
    %vm991 = vcmp.eq.s32.totalorder %v984, 1
    %vm992 = vcmp.eq.s32.totalorder %v988, 1
    %v996 = vcombine.high %v966, %v966
    %v997 = vcombine.high %v967, %v967
    %998 = vrot.lane.b32.xlu0 %v966, 15
    %v999 = vpop.permute.xlu0 %998
    %1000 = vrot.lane.b32.xlu0 %v996, 15
    %v1001 = vpop.permute.xlu0 %1000
    %1002 = vrot.lane.b32.xlu0 %v967, 15
    %v1003 = vpop.permute.xlu0 %1002
    %1004 = vrot.lane.b32.xlu0 %v997, 15
    %v1005 = vpop.permute.xlu0 %1004
    %1006 = vrot.lane.b32.xlu0 %v968, 15
    %v1007 = vpop.permute.xlu0 %1006
    %v1008 = vsel %vm250, %v999, %v1001
    %v1009 = vsel %vm250, %v1001, %v1003
    %v1010 = vsel %vm250, %v1003, %v1005
    %v1011 = vsel %vm250, %v1005, %v1007
    %v1016 = vsel %vm989, %v1008, 0.0
    %v1017 = vsel %vm990, %v1009, 0.0
    %v1018 = vsel %vm991, %v1010, 0.0
    %v1019 = vsel %vm992, %v1011, 0.0
    %1020 = vst [vmem:[#allocation3 + $0x20] sm:$0xf] %v1016
    %1021 = vst [vmem:[#allocation3 + $0x28] sm:$0xf] %v1017
    %1022 = vst [vmem:[#allocation3 + $0x30] sm:$0xf] %v1018
    %1023 = vst [vmem:[#allocation3 + $0x38] sm:$0xf] %v1019
    %v1024 = vld [vmem:[#allocation2] sm:$0xff]
    %v1025 = vld [vmem:[#allocation2 + $0x8] sm:$0xff]
    %v1026 = vld [vmem:[#allocation2 + $0x10] sm:$0xf]
    %s1027 = scalar_lea.vmem [#allocation10], 3
    %v1028 = vld [vmem:[%s1027] ss:$8 sm:$0xf]
    %vm1029 = vcmp.gt.f32.partialorder %v1028, 0.5
    %v1030 = vsel %vm1029, 1, 0
    %v1031 = vlaneseq
    %v1032 = vshrl.u32 %v1031, 7
    %v1033 = vsub.s32 0, %v1032
    %v1034 = vrot.slane %v1030, %v1033
    %v1035 = vlaneseq
    %v1036 = vshrl.u32 %v1035, 7
    %v1037 = vsub.s32 1, %v1036
    %v1038 = vrot.slane %v1030, %v1037
    %v1039 = vlaneseq
    %v1040 = vshrl.u32 %v1039, 7
    %v1041 = vsub.s32 2, %v1040
    %v1042 = vrot.slane %v1030, %v1041
    %v1043 = vlaneseq
    %v1044 = vshrl.u32 %v1043, 7
    %v1045 = vsub.s32 3, %v1044
    %v1046 = vrot.slane %v1030, %v1045
    %vm1047 = vcmp.eq.s32.totalorder %v1034, 1
    %vm1048 = vcmp.eq.s32.totalorder %v1038, 1
    %vm1049 = vcmp.eq.s32.totalorder %v1042, 1
    %vm1050 = vcmp.eq.s32.totalorder %v1046, 1
    %v1054 = vcombine.high %v1024, %v1024
    %v1055 = vcombine.high %v1025, %v1025
    %1056 = vrot.lane.b32.xlu0 %v1024, 1
    %v1057 = vpop.permute.xlu0 %1056
    %1058 = vrot.lane.b32.xlu0 %v1054, 1
    %v1059 = vpop.permute.xlu0 %1058
    %1060 = vrot.lane.b32.xlu0 %v1025, 1
    %v1061 = vpop.permute.xlu0 %1060
    %1062 = vrot.lane.b32.xlu0 %v1055, 1
    %v1063 = vpop.permute.xlu0 %1062
    %1064 = vrot.lane.b32.xlu0 %v1026, 1
    %v1065 = vpop.permute.xlu0 %1064
    %v1066 = vsel %vm309, %v1057, %v1059
    %v1067 = vsel %vm309, %v1059, %v1061
    %v1068 = vsel %vm309, %v1061, %v1063
    %v1069 = vsel %vm309, %v1063, %v1065
    %v1074 = vsel %vm1047, %v1066, 0.0
    %v1075 = vsel %vm1048, %v1067, 0.0
    %v1076 = vsel %vm1049, %v1068, 0.0
    %v1077 = vsel %vm1050, %v1069, 0.0
    %v1082 = vrot.slane %v1074, 4
    %v1083 = vrot.slane %v1075, 4
    %v1084 = vrot.slane %v1076, 4
    %v1085 = vrot.slane %v1077, 4
    %1090 = vst [vmem:[#allocation3 + $0x20] sm:$0xf0] %v1082
    %1091 = vst [vmem:[#allocation3 + $0x28] sm:$0xf0] %v1083
    %1092 = vst [vmem:[#allocation3 + $0x30] sm:$0xf0] %v1084
    %1093 = vst [vmem:[#allocation3 + $0x38] sm:$0xf0] %v1085
    %v1094 = vld [vmem:[#allocation2 + $0x4] sm:$0xff]
    %v1095 = vld [vmem:[#allocation2 + $0xc] sm:$0xff]
    %s1096 = scalar_lea.vmem [#allocation10], 4
    %v1097 = vld [vmem:[%s1096] ss:$8 sm:$0xf]
    %vm1098 = vcmp.gt.f32.partialorder %v1097, 0.5
    %v1099 = vsel %vm1098, 1, 0
    %v1100 = vlaneseq
    %v1101 = vshrl.u32 %v1100, 7
    %v1102 = vsub.s32 0, %v1101
    %v1103 = vrot.slane %v1099, %v1102
    %v1104 = vlaneseq
    %v1105 = vshrl.u32 %v1104, 7
    %v1106 = vsub.s32 1, %v1105
    %v1107 = vrot.slane %v1099, %v1106
    %v1108 = vlaneseq
    %v1109 = vshrl.u32 %v1108, 7
    %v1110 = vsub.s32 2, %v1109
    %v1111 = vrot.slane %v1099, %v1110
    %v1112 = vlaneseq
    %v1113 = vshrl.u32 %v1112, 7
    %v1114 = vsub.s32 3, %v1113
    %v1115 = vrot.slane %v1099, %v1114
    %vm1116 = vcmp.eq.s32.totalorder %v1103, 1
    %vm1117 = vcmp.eq.s32.totalorder %v1107, 1
    %vm1118 = vcmp.eq.s32.totalorder %v1111, 1
    %vm1119 = vcmp.eq.s32.totalorder %v1115, 1
    %v1122 = vcombine.high %v1094, %v1094
    %v1123 = vcombine.high %v1095, %v1095
    %v1126 = vsel %vm1116, %v1094, 0.0
    %v1127 = vsel %vm1117, %v1122, 0.0
    %v1128 = vsel %vm1118, %v1095, 0.0
    %v1129 = vsel %vm1119, %v1123, 0.0
    %1130 = vst [vmem:[#allocation3 + $0x40] sm:$0xf] %v1126
    %1131 = vst [vmem:[#allocation3 + $0x48] sm:$0xf] %v1127
    %1132 = vst [vmem:[#allocation3 + $0x50] sm:$0xf] %v1128
    %1133 = vst [vmem:[#allocation3 + $0x58] sm:$0xf] %v1129
    %v1134 = vld [vmem:[#allocation2 + $0x4] sm:$0xff]
    %v1135 = vld [vmem:[#allocation2 + $0xc] sm:$0xff]
    %v1136 = vld [vmem:[#allocation2 + $0x14] sm:$0xf]
    %s1137 = scalar_lea.vmem [#allocation10], 5
    %v1138 = vld [vmem:[%s1137] ss:$8 sm:$0xf]
    %vm1139 = vcmp.gt.f32.partialorder %v1138, 0.5
    %v1140 = vsel %vm1139, 1, 0
    %v1141 = vlaneseq
    %v1142 = vshrl.u32 %v1141, 7
    %v1143 = vsub.s32 0, %v1142
    %v1144 = vrot.slane %v1140, %v1143
    %v1145 = vlaneseq
    %v1146 = vshrl.u32 %v1145, 7
    %v1147 = vsub.s32 1, %v1146
    %v1148 = vrot.slane %v1140, %v1147
    %v1149 = vlaneseq
    %v1150 = vshrl.u32 %v1149, 7
    %v1151 = vsub.s32 2, %v1150
    %v1152 = vrot.slane %v1140, %v1151
    %v1153 = vlaneseq
    %v1154 = vshrl.u32 %v1153, 7
    %v1155 = vsub.s32 3, %v1154
    %v1156 = vrot.slane %v1140, %v1155
    %vm1157 = vcmp.eq.s32.totalorder %v1144, 1
    %vm1158 = vcmp.eq.s32.totalorder %v1148, 1
    %vm1159 = vcmp.eq.s32.totalorder %v1152, 1
    %vm1160 = vcmp.eq.s32.totalorder %v1156, 1
    %v1164 = vcombine.high %v1134, %v1134
    %v1165 = vcombine.high %v1135, %v1135
    %1166 = vrot.lane.b32.xlu0 %v1134, 127
    %v1167 = vpop.permute.xlu0 %1166
    %1168 = vrot.lane.b32.xlu0 %v1164, 127
    %v1169 = vpop.permute.xlu0 %1168
    %1170 = vrot.lane.b32.xlu0 %v1135, 127
    %v1171 = vpop.permute.xlu0 %1170
    %1172 = vrot.lane.b32.xlu0 %v1165, 127
    %v1173 = vpop.permute.xlu0 %1172
    %1174 = vrot.lane.b32.xlu0 %v1136, 127
    %v1175 = vpop.permute.xlu0 %1174
    %v1176 = vsel %vm420, %v1167, %v1169
    %v1177 = vsel %vm420, %v1169, %v1171
    %v1178 = vsel %vm420, %v1171, %v1173
    %v1179 = vsel %vm420, %v1173, %v1175
    %v1184 = vsel %vm1157, %v1176, 0.0
    %v1185 = vsel %vm1158, %v1177, 0.0
    %v1186 = vsel %vm1159, %v1178, 0.0
    %v1187 = vsel %vm1160, %v1179, 0.0
    %v1192 = vrot.slane %v1184, 4
    %v1193 = vrot.slane %v1185, 4
    %v1194 = vrot.slane %v1186, 4
    %v1195 = vrot.slane %v1187, 4
    %1200 = vst [vmem:[#allocation3 + $0x40] sm:$0xf0] %v1192
    %1201 = vst [vmem:[#allocation3 + $0x48] sm:$0xf0] %v1193
    %1202 = vst [vmem:[#allocation3 + $0x50] sm:$0xf0] %v1194
    %1203 = vst [vmem:[#allocation3 + $0x58] sm:$0xf0] %v1195
    %v1204 = vld [vmem:[#allocation2 + $0x4] sm:$0xff]
    %v1205 = vld [vmem:[#allocation2 + $0xc] sm:$0xff]
    %v1206 = vld [vmem:[#allocation2 + $0x14] sm:$0xf]
    %s1207 = scalar_lea.vmem [#allocation10], 6
    %v1208 = vld [vmem:[%s1207] ss:$8 sm:$0xf]
    %vm1209 = vcmp.gt.f32.partialorder %v1208, 0.5
    %v1210 = vsel %vm1209, 1, 0
    %v1211 = vlaneseq
    %v1212 = vshrl.u32 %v1211, 7
    %v1213 = vsub.s32 0, %v1212
    %v1214 = vrot.slane %v1210, %v1213
    %v1215 = vlaneseq
    %v1216 = vshrl.u32 %v1215, 7
    %v1217 = vsub.s32 1, %v1216
    %v1218 = vrot.slane %v1210, %v1217
    %v1219 = vlaneseq
    %v1220 = vshrl.u32 %v1219, 7
    %v1221 = vsub.s32 2, %v1220
    %v1222 = vrot.slane %v1210, %v1221
    %v1223 = vlaneseq
    %v1224 = vshrl.u32 %v1223, 7
    %v1225 = vsub.s32 3, %v1224
    %v1226 = vrot.slane %v1210, %v1225
    %vm1227 = vcmp.eq.s32.totalorder %v1214, 1
    %vm1228 = vcmp.eq.s32.totalorder %v1218, 1
    %vm1229 = vcmp.eq.s32.totalorder %v1222, 1
    %vm1230 = vcmp.eq.s32.totalorder %v1226, 1
    %v1234 = vcombine.high %v1204, %v1204
    %v1235 = vcombine.high %v1205, %v1205
    %1236 = vrot.lane.b32.xlu0 %v1204, 113
    %v1237 = vpop.permute.xlu0 %1236
    %1238 = vrot.lane.b32.xlu0 %v1234, 113
    %v1239 = vpop.permute.xlu0 %1238
    %1240 = vrot.lane.b32.xlu0 %v1205, 113
    %v1241 = vpop.permute.xlu0 %1240
    %1242 = vrot.lane.b32.xlu0 %v1235, 113
    %v1243 = vpop.permute.xlu0 %1242
    %1244 = vrot.lane.b32.xlu0 %v1206, 113
    %v1245 = vpop.permute.xlu0 %1244
    %v1246 = vsel %vm491, %v1237, %v1239
    %v1247 = vsel %vm491, %v1239, %v1241
    %v1248 = vsel %vm491, %v1241, %v1243
    %v1249 = vsel %vm491, %v1243, %v1245
    %v1254 = vsel %vm1227, %v1246, 0.0
    %v1255 = vsel %vm1228, %v1247, 0.0
    %v1256 = vsel %vm1229, %v1248, 0.0
    %v1257 = vsel %vm1230, %v1249, 0.0
    %1258 = vst [vmem:[#allocation3 + $0x60] sm:$0xf] %v1254
    %1259 = vst [vmem:[#allocation3 + $0x68] sm:$0xf] %v1255
    %1260 = vst [vmem:[#allocation3 + $0x70] sm:$0xf] %v1256
    %1261 = vst [vmem:[#allocation3 + $0x78] sm:$0xf] %v1257
    %v1262 = vld [vmem:[#allocation2 + $0x4] sm:$0xff]
    %v1263 = vld [vmem:[#allocation2 + $0xc] sm:$0xff]
    %v1264 = vld [vmem:[#allocation2 + $0x14] sm:$0xf]
    %s1265 = scalar_lea.vmem [#allocation10], 7
    %v1266 = vld [vmem:[%s1265] ss:$8 sm:$0xf]
    %vm1267 = vcmp.gt.f32.partialorder %v1266, 0.5
    %v1268 = vsel %vm1267, 1, 0
    %v1269 = vlaneseq
    %v1270 = vshrl.u32 %v1269, 7
    %v1271 = vsub.s32 0, %v1270
    %v1272 = vrot.slane %v1268, %v1271
    %v1273 = vlaneseq
    %v1274 = vshrl.u32 %v1273, 7
    %v1275 = vsub.s32 1, %v1274
    %v1276 = vrot.slane %v1268, %v1275
    %v1277 = vlaneseq
    %v1278 = vshrl.u32 %v1277, 7
    %v1279 = vsub.s32 2, %v1278
    %v1280 = vrot.slane %v1268, %v1279
    %v1281 = vlaneseq
    %v1282 = vshrl.u32 %v1281, 7
    %v1283 = vsub.s32 3, %v1282
    %v1284 = vrot.slane %v1268, %v1283
    %vm1285 = vcmp.eq.s32.totalorder %v1272, 1
    %vm1286 = vcmp.eq.s32.totalorder %v1276, 1
    %vm1287 = vcmp.eq.s32.totalorder %v1280, 1
    %vm1288 = vcmp.eq.s32.totalorder %v1284, 1
    %v1292 = vcombine.high %v1262, %v1262
    %v1293 = vcombine.high %v1263, %v1263
    %1294 = vrot.lane.b32.xlu0 %v1262, 112
    %v1295 = vpop.permute.xlu0 %1294
    %1296 = vrot.lane.b32.xlu0 %v1292, 112
    %v1297 = vpop.permute.xlu0 %1296
    %1298 = vrot.lane.b32.xlu0 %v1263, 112
    %v1299 = vpop.permute.xlu0 %1298
    %1300 = vrot.lane.b32.xlu0 %v1293, 112
    %v1301 = vpop.permute.xlu0 %1300
    %1302 = vrot.lane.b32.xlu0 %v1264, 112
    %v1303 = vpop.permute.xlu0 %1302
    %v1304 = vsel %vm550, %v1295, %v1297
    %v1305 = vsel %vm550, %v1297, %v1299
    %v1306 = vsel %vm550, %v1299, %v1301
    %v1307 = vsel %vm550, %v1301, %v1303
    %v1312 = vsel %vm1285, %v1304, 0.0
    %v1313 = vsel %vm1286, %v1305, 0.0
    %v1314 = vsel %vm1287, %v1306, 0.0
    %v1315 = vsel %vm1288, %v1307, 0.0
    %v1320 = vrot.slane %v1312, 4
    %v1321 = vrot.slane %v1313, 4
    %v1322 = vrot.slane %v1314, 4
    %v1323 = vrot.slane %v1315, 4
    %1328 = vst [vmem:[#allocation3 + $0x60] sm:$0xf0] %v1320
    %1329 = vst [vmem:[#allocation3 + $0x68] sm:$0xf0] %v1321
    %1330 = vst [vmem:[#allocation3 + $0x70] sm:$0xf0] %v1322
    %1331 = vst [vmem:[#allocation3 + $0x78] sm:$0xf0] %v1323
    %v1332 = vld [vmem:[#allocation2 + $0x4] sm:$0xff]
    %v1333 = vld [vmem:[#allocation2 + $0xc] sm:$0xff]
    %v1334 = vld [vmem:[#allocation2 + $0x14] sm:$0xf]
    %s1335 = scalar_lea.vmem [#allocation10], 32
    %v1336 = vld [vmem:[%s1335] ss:$8 sm:$0xf]
    %vm1337 = vcmp.gt.f32.partialorder %v1336, 0.5
    %v1338 = vsel %vm1337, 1, 0
    %v1339 = vlaneseq
    %v1340 = vshrl.u32 %v1339, 7
    %v1341 = vsub.s32 0, %v1340
    %v1342 = vrot.slane %v1338, %v1341
    %v1343 = vlaneseq
    %v1344 = vshrl.u32 %v1343, 7
    %v1345 = vsub.s32 1, %v1344
    %v1346 = vrot.slane %v1338, %v1345
    %v1347 = vlaneseq
    %v1348 = vshrl.u32 %v1347, 7
    %v1349 = vsub.s32 2, %v1348
    %v1350 = vrot.slane %v1338, %v1349
    %v1351 = vlaneseq
    %v1352 = vshrl.u32 %v1351, 7
    %v1353 = vsub.s32 3, %v1352
    %v1354 = vrot.slane %v1338, %v1353
    %vm1355 = vcmp.eq.s32.totalorder %v1342, 1
    %vm1356 = vcmp.eq.s32.totalorder %v1346, 1
    %vm1357 = vcmp.eq.s32.totalorder %v1350, 1
    %vm1358 = vcmp.eq.s32.totalorder %v1354, 1
    %v1362 = vcombine.high %v1332, %v1332
    %v1363 = vcombine.high %v1333, %v1333
    %1364 = vrot.lane.b32.xlu0 %v1332, 111
    %v1365 = vpop.permute.xlu0 %1364
    %1366 = vrot.lane.b32.xlu0 %v1362, 111
    %v1367 = vpop.permute.xlu0 %1366
    %1368 = vrot.lane.b32.xlu0 %v1333, 111
    %v1369 = vpop.permute.xlu0 %1368
    %1370 = vrot.lane.b32.xlu0 %v1363, 111
    %v1371 = vpop.permute.xlu0 %1370
    %1372 = vrot.lane.b32.xlu0 %v1334, 111
    %v1373 = vpop.permute.xlu0 %1372
    %v1374 = vsel %vm621, %v1365, %v1367
    %v1375 = vsel %vm621, %v1367, %v1369
    %v1376 = vsel %vm621, %v1369, %v1371
    %v1377 = vsel %vm621, %v1371, %v1373
    %v1382 = vsel %vm1355, %v1374, 0.0
    %v1383 = vsel %vm1356, %v1375, 0.0
    %v1384 = vsel %vm1357, %v1376, 0.0
    %v1385 = vsel %vm1358, %v1377, 0.0
    %1386 = vst [vmem:[#allocation3 + $0x80] sm:$0xf] %v1382
    %1387 = vst [vmem:[#allocation3 + $0x88] sm:$0xf] %v1383
    %1388 = vst [vmem:[#allocation3 + $0x90] sm:$0xf] %v1384
    %1389 = vst [vmem:[#allocation3 + $0x98] sm:$0xf] %v1385
    %1390 = vst.msk [vmem:[%s642] ss:$8 sm:$0xf] %vm641, 1.0
    %1391 = vst.msk [vmem:[%s642] ss:$8 sm:$0x0] %vm641, 1.0
    %v1392 = vld [vmem:[%s3] sm:$0xf]
    %v1393 = vld [vmem:[#allocation3] sm:$0xff]
    %v1394 = vld [vmem:[#allocation3 + $0x8] sm:$0xff]
    %v1395 = vld [vmem:[#allocation3 + $0x10] sm:$0xff]
    %v1396 = vld [vmem:[#allocation3 + $0x18] sm:$0xff]
    %v1397 = vld [vmem:[#allocation3 + $0x20] sm:$0xff]
    %v1398 = vld [vmem:[#allocation3 + $0x28] sm:$0xff]
    %v1399 = vld [vmem:[#allocation3 + $0x30] sm:$0xff]
    %v1400 = vld [vmem:[#allocation3 + $0x38] sm:$0xff]
    %v1401 = vld [vmem:[#allocation3 + $0x40] sm:$0xff]
    %v1402 = vld [vmem:[#allocation3 + $0x48] sm:$0xff]
    %v1403 = vld [vmem:[#allocation3 + $0x50] sm:$0xff]
    %v1404 = vld [vmem:[#allocation3 + $0x58] sm:$0xff]
    %v1405 = vld [vmem:[#allocation3 + $0x60] sm:$0xff]
    %v1406 = vld [vmem:[#allocation3 + $0x68] sm:$0xff]
    %v1407 = vld [vmem:[#allocation3 + $0x70] sm:$0xff]
    %v1408 = vld [vmem:[#allocation3 + $0x78] sm:$0xff]
    %v1409 = vld [vmem:[#allocation3 + $0x80] sm:$0x1f]
    %v1410 = vld [vmem:[#allocation3 + $0x88] sm:$0x1f]
    %v1411 = vld [vmem:[#allocation3 + $0x90] sm:$0x1f]
    %v1412 = vld [vmem:[#allocation3 + $0x98] sm:$0x1f]
    %v1414 = vsel %vm666, %v1392, 0
    %v1417 = vsel %vm670, %v1409, 0
    %v1420 = vsel %vm670, %v1410, 0
    %v1423 = vsel %vm670, %v1411, 0
    %v1426 = vsel %vm670, %v1412, 0
    %1428 = vmatprep.subr.mxu0 0.0
    %1429 = vmatpush1.msra.mxu0 0.0
    %1430 = vmatprep.subr.mxu0 0.0
    %1431 = vmatpush1.msra.mxu0 0.0
    %1432 = vmatprep.subr.mxu0 0.0
    %1433 = vmatpush1.msra.mxu0 0.0
    %1434 = vmatprep.subr.mxu0 0.0
    %1435 = vmatpush1.msra.mxu0 0.0
    %1436 = vmatprep.subr.mxu0 0.0
    %1437 = vmatpush1.msra.mxu0 0.0
    %1438 = vmatprep.subr.mxu0 0.0
    %1439 = vmatpush1.msra.mxu0 0.0
    %1440 = vmatprep.subr.mxu0 0.0
    %1441 = vmatpush1.msra.mxu0 0.0
    %1442 = vmatprep.subr.mxu0 0.0
    %1443 = vmatpush1.msra.mxu0 0.0
    %1444 = vmatprep.subr.mxu0 0.0
    %1445 = vmatpush1.msra.mxu0 0.0
    %1446 = vmatprep.subr.mxu0 0.0
    %1447 = vmatpush1.msra.mxu0 0.0
    %1448 = vmatprep.subr.mxu0 0.0
    %1449 = vmatpush1.msra.mxu0 0.0
    %1450 = vmatprep.subr.mxu0 %v1420
    %1451 = vmatpush1.msra.mxu0 %v1417
    %1452 = vmatprep.subr.mxu0 %v1406
    %1453 = vmatpush1.msra.mxu0 %v1405
    %1454 = vmatprep.subr.mxu0 %v1402
    %1455 = vmatpush1.msra.mxu0 %v1401
    %1456 = vmatprep.subr.mxu0 %v1398
    %1457 = vmatpush1.msra.mxu0 %v1397
    %1458 = vmatprep.subr.mxu0 %v1394
    %1459 = vmatpush1.msra.mxu0 %v1393
    %1460 = vmatprep.subr.mxu0 0.0
    %1461 = vmatpush2.msra.mxu0 0.0
    %1462 = vmatprep.subr.mxu0 0.0
    %1463 = vmatpush2.msra.mxu0 0.0
    %1464 = vmatprep.subr.mxu0 0.0
    %1465 = vmatpush2.msra.mxu0 0.0
    %1466 = vmatprep.subr.mxu0 0.0
    %1467 = vmatpush2.msra.mxu0 0.0
    %1468 = vmatprep.subr.mxu0 0.0
    %1469 = vmatpush2.msra.mxu0 0.0
    %1470 = vmatprep.subr.mxu0 0.0
    %1471 = vmatpush2.msra.mxu0 0.0
    %1472 = vmatprep.subr.mxu0 0.0
    %1473 = vmatpush2.msra.mxu0 0.0
    %1474 = vmatprep.subr.mxu0 0.0
    %1475 = vmatpush2.msra.mxu0 0.0
    %1476 = vmatprep.subr.mxu0 0.0
    %1477 = vmatpush2.msra.mxu0 0.0
    %1478 = vmatprep.subr.mxu0 0.0
    %1479 = vmatpush2.msra.mxu0 0.0
    %1480 = vmatprep.subr.mxu0 0.0
    %1481 = vmatpush2.msra.mxu0 0.0
    %1482 = vmatprep.subr.mxu0 0.0
    %1483 = vmatpush2.msra.mxu0 0.0
    %1484 = vmatprep.subr.mxu0 0.0
    %1485 = vmatpush2.msra.mxu0 0.0
    %1486 = vmatprep.subr.mxu0 0.0
    %1487 = vmatpush2.msra.mxu0 0.0
    %1488 = vmatprep.subr.mxu0 0.0
    %1489 = vmatpush2.msra.mxu0 0.0
    %1490 = vmatprep.subr.mxu0 0.0
    %1491 = vmatpush2.msra.mxu0 0.0
    %1492 = vmatprep.mubr.f32.mxu0 0.0
    %1493 = vmatmul.mubr.f32.gmra.mxu0 %v1414
    %v1494 = vpop.f32.mrf.mxu0
    %v1495 = vadd.f32 0.0, %v1494
    %v1496 = vpop.f32.mrf.mxu0
    %v1497 = vadd.f32 0.0, %v1496
    %1498 = vdwg.mxu0
    %1499 = vmatprep.subr.mxu0 0.0
    %1500 = vmatpush1.msra.mxu0 0.0
    %1501 = vmatprep.subr.mxu0 0.0
    %1502 = vmatpush1.msra.mxu0 0.0
    %1503 = vmatprep.subr.mxu0 0.0
    %1504 = vmatpush1.msra.mxu0 0.0
    %1505 = vmatprep.subr.mxu0 0.0
    %1506 = vmatpush1.msra.mxu0 0.0
    %1507 = vmatprep.subr.mxu0 0.0
    %1508 = vmatpush1.msra.mxu0 0.0
    %1509 = vmatprep.subr.mxu0 0.0
    %1510 = vmatpush1.msra.mxu0 0.0
    %1511 = vmatprep.subr.mxu0 0.0
    %1512 = vmatpush1.msra.mxu0 0.0
    %1513 = vmatprep.subr.mxu0 0.0
    %1514 = vmatpush1.msra.mxu0 0.0
    %1515 = vmatprep.subr.mxu0 0.0
    %1516 = vmatpush1.msra.mxu0 0.0
    %1517 = vmatprep.subr.mxu0 0.0
    %1518 = vmatpush1.msra.mxu0 0.0
    %1519 = vmatprep.subr.mxu0 0.0
    %1520 = vmatpush1.msra.mxu0 0.0
    %1521 = vmatprep.subr.mxu0 %v1426
    %1522 = vmatpush1.msra.mxu0 %v1423
    %1523 = vmatprep.subr.mxu0 %v1408
    %1524 = vmatpush1.msra.mxu0 %v1407
    %1525 = vmatprep.subr.mxu0 %v1404
    %1526 = vmatpush1.msra.mxu0 %v1403
    %1527 = vmatprep.subr.mxu0 %v1400
    %1528 = vmatpush1.msra.mxu0 %v1399
    %1529 = vmatprep.subr.mxu0 %v1396
    %1530 = vmatpush1.msra.mxu0 %v1395
    %1531 = vmatprep.subr.mxu0 0.0
    %1532 = vmatpush2.msra.mxu0 0.0
    %1533 = vmatprep.subr.mxu0 0.0
    %1534 = vmatpush2.msra.mxu0 0.0
    %1535 = vmatprep.subr.mxu0 0.0
    %1536 = vmatpush2.msra.mxu0 0.0
    %1537 = vmatprep.subr.mxu0 0.0
    %1538 = vmatpush2.msra.mxu0 0.0
    %1539 = vmatprep.subr.mxu0 0.0
    %1540 = vmatpush2.msra.mxu0 0.0
    %1541 = vmatprep.subr.mxu0 0.0
    %1542 = vmatpush2.msra.mxu0 0.0
    %1543 = vmatprep.subr.mxu0 0.0
    %1544 = vmatpush2.msra.mxu0 0.0
    %1545 = vmatprep.subr.mxu0 0.0
    %1546 = vmatpush2.msra.mxu0 0.0
    %1547 = vmatprep.subr.mxu0 0.0
    %1548 = vmatpush2.msra.mxu0 0.0
    %1549 = vmatprep.subr.mxu0 0.0
    %1550 = vmatpush2.msra.mxu0 0.0
    %1551 = vmatprep.subr.mxu0 0.0
    %1552 = vmatpush2.msra.mxu0 0.0
    %1553 = vmatprep.subr.mxu0 0.0
    %1554 = vmatpush2.msra.mxu0 0.0
    %1555 = vmatprep.subr.mxu0 0.0
    %1556 = vmatpush2.msra.mxu0 0.0
    %1557 = vmatprep.subr.mxu0 0.0
    %1558 = vmatpush2.msra.mxu0 0.0
    %1559 = vmatprep.subr.mxu0 0.0
    %1560 = vmatpush2.msra.mxu0 0.0
    %1561 = vmatprep.subr.mxu0 0.0
    %1562 = vmatpush2.msra.mxu0 0.0
    %1563 = vmatprep.mubr.f32.mxu0 0.0
    %1564 = vmatmul.mubr.f32.gmra.mxu0 %v1414
    %v1565 = vpop.f32.mrf.mxu0
    %v1566 = vadd.f32 0.0, %v1565
    %v1567 = vpop.f32.mrf.mxu0
    %v1568 = vadd.f32 0.0, %v1567
    %1569 = vdwg.mxu0
    %v1570 = vmax.f32 %v1495, 0.0
    %v1571 = vmax.f32 %v1497, 0.0
    %v1572 = vmax.f32 %v1566, 0.0
    %v1573 = vmax.f32 %v1568, 0.0
    %v1574 = vld [vmem:[#allocation4] sm:$0xff]
    %v1576 = vcombine.high %v1574, %v1574
    %v1578 = vadd.f32 %v1570, %v1574
    %v1579 = vadd.f32 %v1571, %v1576
    %v1580 = vmax.f32 %v1578, 0.0
    %v1581 = vmax.f32 %v1579, 0.0
    %v1584 = vcombine.low %v1580, %v1581
    %1586 = vst [vmem:[#allocation12] sm:$0xff] %v1584
    %v1587 = vld [vmem:[%s76] sm:$0xff]
    %v1589 = vcombine.high %v1587, %v1587
    %v1591 = vadd.f32 %v1572, %v1587
    %v1592 = vadd.f32 %v1573, %v1589
    %v1593 = vmax.f32 %v1591, 0.0
    %v1594 = vmax.f32 %v1592, 0.0
    %v1597 = vcombine.low %v1593, %v1594
    %s1599 = scalar_lea.vmem [#allocation12], 8
    %1600 = vst [vmem:[%s1599] sm:$0xff] %v1597
    // Predicated region
    $region38: #{tpu_custom_call.1} parent=1 // pred_check
      _
    $region39: #{tpu_custom_call.1} parent=1 // pred_check_branch
      %1602 = sbr.rel (0) target = $region41
    $region40: #{tpu_custom_call.1} parent=1 // pred_region
      %s1604 = ssub.s32 256, 256
      %1605 = vsyncadd [#allocation6], %s1604
      %s1606 = sshll.u32 [#allocation12], 4
      %s1607 = int_to_ptr.vmem [resolvable:$true] %s1606
      %1612 = dma.vmem_to_hbm [thread:$0]  %s1607, 256, %s5, [#allocation6], 128, 128, 8
    $region41: #{tpu_custom_call.1} parent=1 // pred_fallthru
      _
    // Predicated region
    $region42: #{tpu_custom_call.1} parent=1 // pred_check
      _
    $region43: #{tpu_custom_call.1} parent=1 // pred_check_branch
      %1614 = sbr.rel (0) target = $region45
    $region44: #{tpu_custom_call.1} parent=1 // pred_region
      %1615 = dma.done [#allocation6], 256
    $region45: #{tpu_custom_call.1} parent=1 // pred_fallthru
      _
    %1616 = vsyncpa [#allocation5], 1
    %1617 = vsyncpa [#allocation8], 1
    %1618 = vsyncpa [#allocation11], 1
    %1619 = vsyncpa [#allocation6], 1

</llo_original>
